<compile_context>
chip_gen: v7x
topology: tpu7x:2x2x1
jax: 0.10.0
libtpu: 0.0.40
codegen_flags: <defaults>
</compile_context>

<pallas_src>
import functools

import jax
import jax.numpy as jnp
import numpy as np
from jax.experimental import pallas as pl
from jax.experimental.pallas import tpu as pltpu


def cbam_kernel(x_ref, w1_ref, w2t_ref, masks_ref, wsp_ref, o_ref,
                *, NB, W, HW, K, P, use_mxu_mlp):
    """CBAM forward for NB batch elements in lane-dense (NB, C, HWp) layout.

    x_ref     : (NB, C, HWp) VMEM   input, spatial dims flattened, padded to 128k
    w1_ref    : (Cr, C)      VMEM   shared-MLP first 1x1 conv weight
    w2t_ref   : (Cr, C)      VMEM   shared-MLP second 1x1 conv weight, transposed
    masks_ref : (2, K, HWp)  VMEM   [0]=row / [1]=col zero-padding border masks
    wsp_ref   : (2*K*K,)     SMEM   spatial conv weight, flat [avg-plane | max-plane]
    o_ref     : (NB, C, HWp) VMEM   output
    """
    f32 = jnp.float32
    C = x_ref.shape[1]
    HWp = x_ref.shape[2]
    Cr = w1_ref.shape[0]

    x = x_ref[...].astype(f32)                                   # (NB, C, HWp)

    # ---------------- channel attention ----------------
    avg_c = jnp.sum(x, axis=2) * (1.0 / HW)                      # (NB, C) lane reduce
    if HWp != HW:                                                # pad lanes must not win the max
        lane = jax.lax.broadcasted_iota(jnp.int32, (1, 1, HWp), 2)
        max_c = jnp.max(jnp.where(lane < HW, x, -jnp.inf), axis=2)
    else:
        max_c = jnp.max(x, axis=2)                               # (NB, C)

    pooled = jnp.concatenate([avg_c, max_c], axis=0)             # (2*NB, C)
    w1 = w1_ref[...].astype(f32)                                 # (Cr, C)
    w2t = w2t_ref[...].astype(f32)                               # (Cr, C)  (= w2.T)

    if use_mxu_mlp:
        # Large Cr: run the shared MLP on the MXU.
        h = jax.lax.dot_general(pooled, w1, (((1,), (1,)), ((), ())),
                                preferred_element_type=f32)      # (2*NB, Cr)
        h = jnp.maximum(h, 0.0)
        h = h[:NB] + h[NB:]                                      # (NB, Cr)
        logits = jnp.dot(h, w2t, preferred_element_type=f32)     # (NB, C)
    else:
        # Tiny Cr: rank-Cr VPU update; one lane reduce per hidden unit (avg & max stacked).
        logits = jnp.zeros((NB, C), f32)
        for j in range(Cr):
            w1j = w1[j][None, :]                                 # (1, C)
            hj = jnp.maximum(jnp.sum(pooled * w1j, axis=1, keepdims=True), 0.0)  # (2*NB, 1)
            logits = logits + (hj[:NB] + hj[NB:]) * w2t[j][None, :]
    ch_att = jax.nn.sigmoid(logits)                              # (NB, C)

    # ---------------- spatial attention ----------------
    x_ch = x * ch_att[:, :, None]                                # transient (dead after reduces)
    avg_sp = jnp.sum(x_ch, axis=1) * (1.0 / C)                   # (NB, HWp) sublane reduce
    max_sp = jnp.max(x_ch, axis=1)                               # (NB, HWp)

    # Column pass: per dw one lane roll (XLU) + border-mask multiply per plane.
    # Wrapped taps are provably zeroed by the masks (pad lanes are zero as well).
    q_avg, q_max = [], []
    for i_dw in range(K):
        dw = i_dw - P
        if dw == 0:
            q_avg.append(avg_sp)
            q_max.append(max_sp)
        else:
            sh = (-dw) % HWp                                     # q[o] = plane[o + dw]
            cm = masks_ref[1, pl.ds(i_dw, 1), :]                 # (1, HWp) column mask
            q_avg.append(pltpu.roll(avg_sp, shift=sh, axis=1) * cm)
            q_max.append(pltpu.roll(max_sp, shift=sh, axis=1) * cm)

    # Row pass: per dh a VPU weighted sum of the 7 column terms (both planes,
    # SMEM scalar weights), then one lane roll by dh*W and a row-mask multiply.
    conv0 = jnp.zeros((NB, HWp), f32)
    conv1 = jnp.zeros((NB, HWp), f32)
    for i_dh in range(K):
        dh = i_dh - P
        s0 = jnp.zeros((NB, HWp), f32)
        s1 = jnp.zeros((NB, HWp), f32)
        for i_dw in range(K):
            t = i_dh * K + i_dw
            wa = wsp_ref[t]                                      # avg-plane tap (SMEM scalar)
            wm = wsp_ref[K * K + t]                              # max-plane tap
            term = wa * q_avg[i_dw] + wm * q_max[i_dw]
            if i_dw % 2 == 0:
                s0 = s0 + term
            else:
                s1 = s1 + term
        s = s0 + s1                                              # (NB, HWp)
        if dh == 0:
            r = s
        else:
            rm = masks_ref[0, pl.ds(i_dh, 1), :]                 # (1, HWp) row mask
            r = pltpu.roll(s, shift=(-dh * W) % HWp, axis=1) * rm
        if i_dh % 2 == 0:
            conv0 = conv0 + r
        else:
            conv1 = conv1 + r
    sp_att = jax.nn.sigmoid(conv0 + conv1)                       # (NB, HWp)

    # ---------------- fused output (no o_ref round trip) ----------------
    o_ref[...] = (x * ch_att[:, :, None] * sp_att[:, None, :]).astype(o_ref.dtype)


def _vmem_capacity_bytes():
    try:
        cap = getattr(pltpu.get_tpu_info(), "vmem_capacity_bytes", None)
        if cap:
            return int(cap)
    except Exception:
        pass
    return 64 * 1024 * 1024          # conservative fallback (v7x per-TC VMEM)


def _pick_batch_block(N, C, HWp, itemsize, vmem_cap):
    """Largest divisor NB of N whose pipeline footprint fits ~1/3 of VMEM.

    Per batch element: double-buffered input + output blocks (2 * 2 * itemsize)
    plus ~two f32 in-kernel temporaries (8 bytes).
    """
    budget = vmem_cap // 3
    per_image = max(C * HWp * (4 * itemsize + 8), 1)
    nb = max(1, min(N, budget // per_image))
    if N >= 2:
        nb = min(nb, N // 2)   # >= 2 grid steps so both v7x TensorCores get work
    nb = max(nb, 1)
    while N % nb:
        nb -= 1
    return nb


def _border_masks(H, W, K, HWp):
    """(2, K, HWp) f32: [0,kh]=row validity for dh=kh-P, [1,kw]=col validity.

    Lanes >= H*W (128-alignment pad) are masked out entirely.
    """
    P = (K - 1) // 2
    HW = H * W
    idx = np.arange(HWp)
    valid = idx < HW
    hh, ww = idx // W, idx % W
    offs = np.arange(K) - P
    row = (hh[None, :] + offs[:, None] >= 0) & (hh[None, :] + offs[:, None] < H)
    col = (ww[None, :] + offs[:, None] >= 0) & (ww[None, :] + offs[:, None] < W)
    return (np.stack([row, col]) & valid[None, None, :]).astype(np.float32)


def cbam_pallas(x, w1, w2, w_spatial):
    N, C, H, W = x.shape
    Cr = w1.shape[0]
    K = w_spatial.shape[-1]
    P = (K - 1) // 2
    HW = H * W
    HWp = ((HW + 127) // 128) * 128                  # lane-dense last dim
    itemsize = jnp.dtype(x.dtype).itemsize

    vmem_cap = _vmem_capacity_bytes()
    NB = _pick_batch_block(N, C, HWp, itemsize, vmem_cap)

    x_flat = x.reshape(N, C, HW)                     # free reshape -> lane-dense layout
    if HWp != HW:
        x_flat = jnp.pad(x_flat, ((0, 0), (0, 0), (0, HWp - HW)))

    masks = jnp.asarray(_border_masks(H, W, K, HWp))         # (2, K, HWp)
    wsp_flat = w_spatial.astype(jnp.float32).reshape(-1)     # (2*K*K,) [avg | max]
    w2t = jnp.transpose(w2)                                  # (Cr, C)

    # Explicit scoped-VMEM limit: double-buffered in+out + f32 temporaries + consts.
    block_bytes = NB * C * HWp * itemsize
    temp_bytes = 2 * NB * C * HWp * 4
    const_bytes = (2 * K * HWp + 4 * Cr * C) * 4
    vmem_need = 4 * block_bytes + temp_bytes + 2 * const_bytes + (2 << 20)
    vmem_limit = int(min(vmem_cap * 7 // 8, max(vmem_need, 32 << 20)))
    vmem_limit = max(vmem_limit, vmem_need)

    cost = pl.CostEstimate(
        flops=int(N * C * HWp * 10 + N * HWp * K * K * 4 + 4 * N * C * max(Cr, 1)),
        transcendentals=int(N * (C + HWp)),
        bytes_accessed=int(2 * N * C * HWp * itemsize),
    )

    kernel = functools.partial(cbam_kernel, NB=NB, W=W, HW=HW, K=K, P=P,
                               use_mxu_mlp=(Cr >= 8))
    # TODO(synk): for bf16 inputs on v6e/v7x keep the two full-block elementwise
    # passes in bf16 and cast only the reductions / MLP / conv accumulation to f32.
    out_flat = pl.pallas_call(
        kernel,
        out_shape=jax.ShapeDtypeStruct((N, C, HWp), x.dtype),
        grid_spec=pltpu.PrefetchScalarGridSpec(
            num_scalar_prefetch=0,
            grid=(N // NB,),
            in_specs=[
                pl.BlockSpec((NB, C, HWp), lambda b: (b, 0, 0)),
                pl.BlockSpec((Cr, C), lambda b: (0, 0)),
                pl.BlockSpec((Cr, C), lambda b: (0, 0)),
                pl.BlockSpec((2, K, HWp), lambda b: (0, 0, 0)),
                pl.BlockSpec(memory_space=pltpu.MemorySpace.SMEM),
            ],
            out_specs=pl.BlockSpec((NB, C, HWp), lambda b: (b, 0, 0)),
        ),
        compiler_params=pltpu.CompilerParams(
            dimension_semantics=("parallel",),
            vmem_limit_bytes=vmem_limit),
        cost_estimate=cost,
    )(x_flat, w1, w2t, masks, wsp_flat)

    out = out_flat[:, :, :HW] if HWp != HW else out_flat
    return out.reshape(N, C, H, W)


def cbam_ref(x, w1, w2, w_spatial):
    """Pure-JAX reference matching the PyTorch forward (f32-accurate)."""
    hp = jax.lax.Precision.HIGHEST
    avg = jnp.mean(x, axis=(2, 3))                               # (N, C)
    mx = jnp.max(x, axis=(2, 3))                                 # (N, C)

    def mlp(v):
        h = jnp.maximum(jnp.dot(v, w1.T, precision=hp), 0.0)
        return jnp.dot(h, w2.T, precision=hp)

    ch = jax.nn.sigmoid(mlp(avg) + mlp(mx))                      # (N, C)
    x_ch = x * ch[:, :, None, None]
    avg_sp = jnp.mean(x_ch, axis=1, keepdims=True)
    max_sp = jnp.max(x_ch, axis=1, keepdims=True)
    feat = jnp.concatenate([avg_sp, max_sp], axis=1)             # (N, 2, H, W)
    conv = jax.lax.conv_general_dilated(
        feat, w_spatial, (1, 1), "SAME",
        dimension_numbers=("NCHW", "OIHW", "NCHW"), precision=hp)
    return x_ch * jax.nn.sigmoid(conv)


if __name__ == "__main__":
    N, C, H, W = 2, 32, 16, 16
    reduction, K = 16, 7
    Cr = C // reduction

    key = jax.random.PRNGKey(0)
    kx, k1, k2, k3 = jax.random.split(key, 4)
    x = jax.random.normal(kx, (N, C, H, W), jnp.float32)
    # deterministic synthetic parameters (shapes from the nn.Module __init__)
    w1 = jax.random.normal(k1, (Cr, C), jnp.float32) * 0.2              # Conv2d(C, C//r, 1)
    w2 = jax.random.normal(k2, (C, Cr), jnp.float32) * 0.2              # Conv2d(C//r, C, 1)
    w_spatial = jax.random.normal(k3, (1, 2, K, K), jnp.float32) * 0.1  # Conv2d(2, 1, 7)

    out = cbam_pallas(x, w1, w2, w_spatial)
    out = jax.block_until_ready(out)

    ref = cbam_ref(x, w1, w2, w_spatial)
    err = float(jnp.max(jnp.abs(out - ref)))
    assert err < 1e-3, f"mismatch vs reference: max abs err = {err}"
    print("KERNEL_OK")
</pallas_src>

<mosaic_0001>
module attributes {stable_mosaic.version = 11 : i64} {
  func.func @cbam_kernel(%arg0: i32, %arg1: memref<1x32x256xf32, #tpu.memory_space<vmem>>, %arg2: memref<2x32xf32, #tpu.memory_space<vmem>>, %arg3: memref<2x32xf32, #tpu.memory_space<vmem>>, %arg4: memref<2x7x256xf32, #tpu.memory_space<vmem>>, %arg5: memref<98xf32, #tpu.memory_space<smem>>, %arg6: memref<1x32x256xf32, #tpu.memory_space<vmem>>) attributes {dimension_semantics = [#tpu.dimension_semantics<parallel>], iteration_bounds = array<i64: 2>, scalar_prefetch = 0 : i64, scratch_operands = 0 : i64, tpu.core_type = #tpu.core_type<tc>, window_params = [{transform_indices = @transform_0, window_bounds = array<i64: 1, 32, 256>}, {pipeline_mode = #tpu.pipeline_mode<synchronous>, transform_indices = @transform_1, window_bounds = array<i64: 2, 32>}, {pipeline_mode = #tpu.pipeline_mode<synchronous>, transform_indices = @transform_2, window_bounds = array<i64: 2, 32>}, {pipeline_mode = #tpu.pipeline_mode<synchronous>, transform_indices = @transform_3, window_bounds = array<i64: 2, 7, 256>}, {transform_indices = @transform_4, window_bounds = array<i64: 98>}, {transform_indices = @transform_5, window_bounds = array<i64: 1, 32, 256>}]} {
    %c0 = arith.constant 0 : index
    %c0_0 = arith.constant 0 : index
    %c0_1 = arith.constant 0 : index
    %0 = vector.load %arg1[%c0, %c0_0, %c0_1] : memref<1x32x256xf32, #tpu.memory_space<vmem>>, vector<1x32x256xf32>
    %cst = arith.constant dense<0.000000e+00> : vector<1x32xf32>
    %1 = vector.multi_reduction <add>, %0, %cst [2] : vector<1x32x256xf32> to vector<1x32xf32>
    %cst_2 = arith.constant 3.906250e-03 : f32
    %2 = vector.broadcast %cst_2 : f32 to vector<1x32xf32>
    %3 = arith.mulf %1, %2 : vector<1x32xf32>
    %cst_3 = arith.constant dense<0xFF800000> : vector<1x32xf32>
    %4 = vector.multi_reduction <maximumf>, %0, %cst_3 [2] : vector<1x32x256xf32> to vector<1x32xf32>
    %5 = tpu.concatenate %3, %4 in 0 : vector<1x32xf32>, vector<1x32xf32> -> vector<2x32xf32>
    %c0_4 = arith.constant 0 : index
    %c0_5 = arith.constant 0 : index
    %6 = vector.load %arg2[%c0_4, %c0_5] : memref<2x32xf32, #tpu.memory_space<vmem>>, vector<2x32xf32>
    %c0_6 = arith.constant 0 : index
    %c0_7 = arith.constant 0 : index
    %7 = vector.load %arg3[%c0_6, %c0_7] : memref<2x32xf32, #tpu.memory_space<vmem>>, vector<2x32xf32>
    %cst_8 = arith.constant 0.000000e+00 : f32
    %8 = vector.broadcast %cst_8 : f32 to vector<1x32xf32>
    %9 = vector.extract_strided_slice %6 {offsets = [0, 0], sizes = [1, 32], strides = [1, 1]} : vector<2x32xf32> to vector<1x32xf32>
    %10 = vector.shape_cast %9 : vector<1x32xf32> to vector<32xf32>
    %11 = vector.shape_cast %10 : vector<32xf32> to vector<1x32xf32>
    %12 = vector.broadcast %11 : vector<1x32xf32> to vector<2x32xf32>
    %13 = arith.mulf %5, %12 : vector<2x32xf32>
    %cst_9 = arith.constant dense<0.000000e+00> : vector<2xf32>
    %14 = vector.multi_reduction <add>, %13, %cst_9 [1] : vector<2x32xf32> to vector<2xf32>
    %15 = vector.shape_cast %14 : vector<2xf32> to vector<2x1xf32>
    %cst_10 = arith.constant 0.000000e+00 : f32
    %16 = vector.broadcast %cst_10 : f32 to vector<2x1xf32>
    %17 = arith.maximumf %15, %16 : vector<2x1xf32>
    %18 = vector.extract_strided_slice %17 {offsets = [0, 0], sizes = [1, 1], strides = [1, 1]} : vector<2x1xf32> to vector<1x1xf32>
    %19 = vector.extract_strided_slice %17 {offsets = [1, 0], sizes = [1, 1], strides = [1, 1]} : vector<2x1xf32> to vector<1x1xf32>
    %20 = arith.addf %18, %19 : vector<1x1xf32>
    %21 = vector.extract_strided_slice %7 {offsets = [0, 0], sizes = [1, 32], strides = [1, 1]} : vector<2x32xf32> to vector<1x32xf32>
    %22 = vector.shape_cast %21 : vector<1x32xf32> to vector<32xf32>
    %23 = vector.shape_cast %22 : vector<32xf32> to vector<1x32xf32>
    %24 = vector.broadcast %20 : vector<1x1xf32> to vector<1x32xf32>
    %25 = arith.mulf %24, %23 : vector<1x32xf32>
    %26 = arith.addf %8, %25 : vector<1x32xf32>
    %27 = vector.extract_strided_slice %6 {offsets = [1, 0], sizes = [1, 32], strides = [1, 1]} : vector<2x32xf32> to vector<1x32xf32>
    %28 = vector.shape_cast %27 : vector<1x32xf32> to vector<32xf32>
    %29 = vector.shape_cast %28 : vector<32xf32> to vector<1x32xf32>
    %30 = vector.broadcast %29 : vector<1x32xf32> to vector<2x32xf32>
    %31 = arith.mulf %5, %30 : vector<2x32xf32>
    %cst_11 = arith.constant dense<0.000000e+00> : vector<2xf32>
    %32 = vector.multi_reduction <add>, %31, %cst_11 [1] : vector<2x32xf32> to vector<2xf32>
    %33 = vector.shape_cast %32 : vector<2xf32> to vector<2x1xf32>
    %cst_12 = arith.constant 0.000000e+00 : f32
    %34 = vector.broadcast %cst_12 : f32 to vector<2x1xf32>
    %35 = arith.maximumf %33, %34 : vector<2x1xf32>
    %36 = vector.extract_strided_slice %35 {offsets = [0, 0], sizes = [1, 1], strides = [1, 1]} : vector<2x1xf32> to vector<1x1xf32>
    %37 = vector.extract_strided_slice %35 {offsets = [1, 0], sizes = [1, 1], strides = [1, 1]} : vector<2x1xf32> to vector<1x1xf32>
    %38 = arith.addf %36, %37 : vector<1x1xf32>
    %39 = vector.extract_strided_slice %7 {offsets = [1, 0], sizes = [1, 32], strides = [1, 1]} : vector<2x32xf32> to vector<1x32xf32>
    %40 = vector.shape_cast %39 : vector<1x32xf32> to vector<32xf32>
    %41 = vector.shape_cast %40 : vector<32xf32> to vector<1x32xf32>
    %42 = vector.broadcast %38 : vector<1x1xf32> to vector<1x32xf32>
    %43 = arith.mulf %42, %41 : vector<1x32xf32>
    %44 = arith.addf %26, %43 : vector<1x32xf32>
    %45 = arith.negf %44 : vector<1x32xf32>
    %46 = math.exp %45 : vector<1x32xf32>
    %cst_13 = arith.constant 1.000000e+00 : f32
    %47 = vector.broadcast %cst_13 : f32 to vector<1x32xf32>
    %48 = arith.addf %47, %46 : vector<1x32xf32>
    %49 = arith.divf %47, %48 : vector<1x32xf32>
    %50 = vector.shape_cast %49 : vector<1x32xf32> to vector<1x32x1xf32>
    %51 = vector.broadcast %50 : vector<1x32x1xf32> to vector<1x32x256xf32>
    %52 = arith.mulf %0, %51 : vector<1x32x256xf32>
    %cst_14 = arith.constant dense<0.000000e+00> : vector<1x256xf32>
    %53 = vector.multi_reduction <add>, %52, %cst_14 [1] : vector<1x32x256xf32> to vector<1x256xf32>
    %cst_15 = arith.constant 3.125000e-02 : f32
    %54 = vector.broadcast %cst_15 : f32 to vector<1x256xf32>
    %55 = arith.mulf %53, %54 : vector<1x256xf32>
    %cst_16 = arith.constant dense<0xFF800000> : vector<1x256xf32>
    %56 = vector.multi_reduction <maximumf>, %52, %cst_16 [1] : vector<1x32x256xf32> to vector<1x256xf32>
    %c1 = arith.constant 1 : index
    %c0_17 = arith.constant 0 : index
    %c0_18 = arith.constant 0 : index
    %57 = vector.load %arg4[%c1, %c0_17, %c0_18] : memref<2x7x256xf32, #tpu.memory_space<vmem>>, vector<1x1x256xf32>
    %58 = vector.shape_cast %57 : vector<1x1x256xf32> to vector<1x256xf32>
    %c3_i32 = arith.constant 3 : i32
    %59 = tpu.dynamic_rotate %55 by %c3_i32 dim 1 : vector<1x256xf32>, i32 -> vector<1x256xf32>
    %60 = arith.mulf %59, %58 : vector<1x256xf32>
    %c3_i32_19 = arith.constant 3 : i32
    %61 = tpu.dynamic_rotate %56 by %c3_i32_19 dim 1 : vector<1x256xf32>, i32 -> vector<1x256xf32>
    %62 = arith.mulf %61, %58 : vector<1x256xf32>
    %c1_20 = arith.constant 1 : index
    %c1_21 = arith.constant 1 : index
    %c0_22 = arith.constant 0 : index
    %63 = vector.load %arg4[%c1_20, %c1_21, %c0_22] : memref<2x7x256xf32, #tpu.memory_space<vmem>>, vector<1x1x256xf32>
    %64 = vector.shape_cast %63 : vector<1x1x256xf32> to vector<1x256xf32>
    %c2_i32 = arith.constant 2 : i32
    %65 = tpu.dynamic_rotate %55 by %c2_i32 dim 1 : vector<1x256xf32>, i32 -> vector<1x256xf32>
    %66 = arith.mulf %65, %64 : vector<1x256xf32>
    %c2_i32_23 = arith.constant 2 : i32
    %67 = tpu.dynamic_rotate %56 by %c2_i32_23 dim 1 : vector<1x256xf32>, i32 -> vector<1x256xf32>
    %68 = arith.mulf %67, %64 : vector<1x256xf32>
    %c1_24 = arith.constant 1 : index
    %c2 = arith.constant 2 : index
    %c0_25 = arith.constant 0 : index
    %69 = vector.load %arg4[%c1_24, %c2, %c0_25] : memref<2x7x256xf32, #tpu.memory_space<vmem>>, vector<1x1x256xf32>
    %70 = vector.shape_cast %69 : vector<1x1x256xf32> to vector<1x256xf32>
    %c1_i32 = arith.constant 1 : i32
    %71 = tpu.dynamic_rotate %55 by %c1_i32 dim 1 : vector<1x256xf32>, i32 -> vector<1x256xf32>
    %72 = arith.mulf %71, %70 : vector<1x256xf32>
    %c1_i32_26 = arith.constant 1 : i32
    %73 = tpu.dynamic_rotate %56 by %c1_i32_26 dim 1 : vector<1x256xf32>, i32 -> vector<1x256xf32>
    %74 = arith.mulf %73, %70 : vector<1x256xf32>
    %c1_27 = arith.constant 1 : index
    %c4 = arith.constant 4 : index
    %c0_28 = arith.constant 0 : index
    %75 = vector.load %arg4[%c1_27, %c4, %c0_28] : memref<2x7x256xf32, #tpu.memory_space<vmem>>, vector<1x1x256xf32>
    %76 = vector.shape_cast %75 : vector<1x1x256xf32> to vector<1x256xf32>
    %c255_i32 = arith.constant 255 : i32
    %77 = tpu.dynamic_rotate %55 by %c255_i32 dim 1 : vector<1x256xf32>, i32 -> vector<1x256xf32>
    %78 = arith.mulf %77, %76 : vector<1x256xf32>
    %c255_i32_29 = arith.constant 255 : i32
    %79 = tpu.dynamic_rotate %56 by %c255_i32_29 dim 1 : vector<1x256xf32>, i32 -> vector<1x256xf32>
    %80 = arith.mulf %79, %76 : vector<1x256xf32>
    %c1_30 = arith.constant 1 : index
    %c5 = arith.constant 5 : index
    %c0_31 = arith.constant 0 : index
    %81 = vector.load %arg4[%c1_30, %c5, %c0_31] : memref<2x7x256xf32, #tpu.memory_space<vmem>>, vector<1x1x256xf32>
    %82 = vector.shape_cast %81 : vector<1x1x256xf32> to vector<1x256xf32>
    %c254_i32 = arith.constant 254 : i32
    %83 = tpu.dynamic_rotate %55 by %c254_i32 dim 1 : vector<1x256xf32>, i32 -> vector<1x256xf32>
    %84 = arith.mulf %83, %82 : vector<1x256xf32>
    %c254_i32_32 = arith.constant 254 : i32
    %85 = tpu.dynamic_rotate %56 by %c254_i32_32 dim 1 : vector<1x256xf32>, i32 -> vector<1x256xf32>
    %86 = arith.mulf %85, %82 : vector<1x256xf32>
    %c1_33 = arith.constant 1 : index
    %c6 = arith.constant 6 : index
    %c0_34 = arith.constant 0 : index
    %87 = vector.load %arg4[%c1_33, %c6, %c0_34] : memref<2x7x256xf32, #tpu.memory_space<vmem>>, vector<1x1x256xf32>
    %88 = vector.shape_cast %87 : vector<1x1x256xf32> to vector<1x256xf32>
    %c253_i32 = arith.constant 253 : i32
    %89 = tpu.dynamic_rotate %55 by %c253_i32 dim 1 : vector<1x256xf32>, i32 -> vector<1x256xf32>
    %90 = arith.mulf %89, %88 : vector<1x256xf32>
    %c253_i32_35 = arith.constant 253 : i32
    %91 = tpu.dynamic_rotate %56 by %c253_i32_35 dim 1 : vector<1x256xf32>, i32 -> vector<1x256xf32>
    %92 = arith.mulf %91, %88 : vector<1x256xf32>
    %cst_36 = arith.constant 0.000000e+00 : f32
    %93 = vector.broadcast %cst_36 : f32 to vector<1x256xf32>
    %cst_37 = arith.constant 0.000000e+00 : f32
    %94 = vector.broadcast %cst_37 : f32 to vector<1x256xf32>
    %cst_38 = arith.constant 0.000000e+00 : f32
    %95 = vector.broadcast %cst_38 : f32 to vector<1x256xf32>
    %cst_39 = arith.constant 0.000000e+00 : f32
    %96 = vector.broadcast %cst_39 : f32 to vector<1x256xf32>
    %c0_40 = arith.constant 0 : index
    %97 = memref.load %arg5[%c0_40] : memref<98xf32, #tpu.memory_space<smem>>
    %c49 = arith.constant 49 : index
    %98 = memref.load %arg5[%c49] : memref<98xf32, #tpu.memory_space<smem>>
    %99 = vector.broadcast %97 : f32 to vector<1x256xf32>
    %100 = arith.mulf %99, %60 : vector<1x256xf32>
    %101 = vector.broadcast %98 : f32 to vector<1x256xf32>
    %102 = arith.mulf %101, %62 : vector<1x256xf32>
    %103 = arith.addf %100, %102 : vector<1x256xf32>
    %104 = arith.addf %95, %103 : vector<1x256xf32>
    %c1_41 = arith.constant 1 : index
    %105 = memref.load %arg5[%c1_41] : memref<98xf32, #tpu.memory_space<smem>>
    %c50 = arith.constant 50 : index
    %106 = memref.load %arg5[%c50] : memref<98xf32, #tpu.memory_space<smem>>
    %107 = vector.broadcast %105 : f32 to vector<1x256xf32>
    %108 = arith.mulf %107, %66 : vector<1x256xf32>
    %109 = vector.broadcast %106 : f32 to vector<1x256xf32>
    %110 = arith.mulf %109, %68 : vector<1x256xf32>
    %111 = arith.addf %108, %110 : vector<1x256xf32>
    %112 = arith.addf %96, %111 : vector<1x256xf32>
    %c2_42 = arith.constant 2 : index
    %113 = memref.load %arg5[%c2_42] : memref<98xf32, #tpu.memory_space<smem>>
    %c51 = arith.constant 51 : index
    %114 = memref.load %arg5[%c51] : memref<98xf32, #tpu.memory_space<smem>>
    %115 = vector.broadcast %113 : f32 to vector<1x256xf32>
    %116 = arith.mulf %115, %72 : vector<1x256xf32>
    %117 = vector.broadcast %114 : f32 to vector<1x256xf32>
    %118 = arith.mulf %117, %74 : vector<1x256xf32>
    %119 = arith.addf %116, %118 : vector<1x256xf32>
    %120 = arith.addf %104, %119 : vector<1x256xf32>
    %c3 = arith.constant 3 : index
    %121 = memref.load %arg5[%c3] : memref<98xf32, #tpu.memory_space<smem>>
    %c52 = arith.constant 52 : index
    %122 = memref.load %arg5[%c52] : memref<98xf32, #tpu.memory_space<smem>>
    %123 = vector.broadcast %121 : f32 to vector<1x256xf32>
    %124 = arith.mulf %123, %55 : vector<1x256xf32>
    %125 = vector.broadcast %122 : f32 to vector<1x256xf32>
    %126 = arith.mulf %125, %56 : vector<1x256xf32>
    %127 = arith.addf %124, %126 : vector<1x256xf32>
    %128 = arith.addf %112, %127 : vector<1x256xf32>
    %c4_43 = arith.constant 4 : index
    %129 = memref.load %arg5[%c4_43] : memref<98xf32, #tpu.memory_space<smem>>
    %c53 = arith.constant 53 : index
    %130 = memref.load %arg5[%c53] : memref<98xf32, #tpu.memory_space<smem>>
    %131 = vector.broadcast %129 : f32 to vector<1x256xf32>
    %132 = arith.mulf %131, %78 : vector<1x256xf32>
    %133 = vector.broadcast %130 : f32 to vector<1x256xf32>
    %134 = arith.mulf %133, %80 : vector<1x256xf32>
    %135 = arith.addf %132, %134 : vector<1x256xf32>
    %136 = arith.addf %120, %135 : vector<1x256xf32>
    %c5_44 = arith.constant 5 : index
    %137 = memref.load %arg5[%c5_44] : memref<98xf32, #tpu.memory_space<smem>>
    %c54 = arith.constant 54 : index
    %138 = memref.load %arg5[%c54] : memref<98xf32, #tpu.memory_space<smem>>
    %139 = vector.broadcast %137 : f32 to vector<1x256xf32>
    %140 = arith.mulf %139, %84 : vector<1x256xf32>
    %141 = vector.broadcast %138 : f32 to vector<1x256xf32>
    %142 = arith.mulf %141, %86 : vector<1x256xf32>
    %143 = arith.addf %140, %142 : vector<1x256xf32>
    %144 = arith.addf %128, %143 : vector<1x256xf32>
    %c6_45 = arith.constant 6 : index
    %145 = memref.load %arg5[%c6_45] : memref<98xf32, #tpu.memory_space<smem>>
    %c55 = arith.constant 55 : index
    %146 = memref.load %arg5[%c55] : memref<98xf32, #tpu.memory_space<smem>>
    %147 = vector.broadcast %145 : f32 to vector<1x256xf32>
    %148 = arith.mulf %147, %90 : vector<1x256xf32>
    %149 = vector.broadcast %146 : f32 to vector<1x256xf32>
    %150 = arith.mulf %149, %92 : vector<1x256xf32>
    %151 = arith.addf %148, %150 : vector<1x256xf32>
    %152 = arith.addf %136, %151 : vector<1x256xf32>
    %153 = arith.addf %152, %144 : vector<1x256xf32>
    %c0_46 = arith.constant 0 : index
    %c0_47 = arith.constant 0 : index
    %c0_48 = arith.constant 0 : index
    %154 = vector.load %arg4[%c0_46, %c0_47, %c0_48] : memref<2x7x256xf32, #tpu.memory_space<vmem>>, vector<1x1x256xf32>
    %155 = vector.shape_cast %154 : vector<1x1x256xf32> to vector<1x256xf32>
    %c48_i32 = arith.constant 48 : i32
    %156 = tpu.dynamic_rotate %153 by %c48_i32 dim 1 : vector<1x256xf32>, i32 -> vector<1x256xf32>
    %157 = arith.mulf %156, %155 : vector<1x256xf32>
    %158 = arith.addf %93, %157 : vector<1x256xf32>
    %cst_49 = arith.constant 0.000000e+00 : f32
    %159 = vector.broadcast %cst_49 : f32 to vector<1x256xf32>
    %cst_50 = arith.constant 0.000000e+00 : f32
    %160 = vector.broadcast %cst_50 : f32 to vector<1x256xf32>
    %c7 = arith.constant 7 : index
    %161 = memref.load %arg5[%c7] : memref<98xf32, #tpu.memory_space<smem>>
    %c56 = arith.constant 56 : index
    %162 = memref.load %arg5[%c56] : memref<98xf32, #tpu.memory_space<smem>>
    %163 = vector.broadcast %161 : f32 to vector<1x256xf32>
    %164 = arith.mulf %163, %60 : vector<1x256xf32>
    %165 = vector.broadcast %162 : f32 to vector<1x256xf32>
    %166 = arith.mulf %165, %62 : vector<1x256xf32>
    %167 = arith.addf %164, %166 : vector<1x256xf32>
    %168 = arith.addf %159, %167 : vector<1x256xf32>
    %c8 = arith.constant 8 : index
    %169 = memref.load %arg5[%c8] : memref<98xf32, #tpu.memory_space<smem>>
    %c57 = arith.constant 57 : index
    %170 = memref.load %arg5[%c57] : memref<98xf32, #tpu.memory_space<smem>>
    %171 = vector.broadcast %169 : f32 to vector<1x256xf32>
    %172 = arith.mulf %171, %66 : vector<1x256xf32>
    %173 = vector.broadcast %170 : f32 to vector<1x256xf32>
    %174 = arith.mulf %173, %68 : vector<1x256xf32>
    %175 = arith.addf %172, %174 : vector<1x256xf32>
    %176 = arith.addf %160, %175 : vector<1x256xf32>
    %c9 = arith.constant 9 : index
    %177 = memref.load %arg5[%c9] : memref<98xf32, #tpu.memory_space<smem>>
    %c58 = arith.constant 58 : index
    %178 = memref.load %arg5[%c58] : memref<98xf32, #tpu.memory_space<smem>>
    %179 = vector.broadcast %177 : f32 to vector<1x256xf32>
    %180 = arith.mulf %179, %72 : vector<1x256xf32>
    %181 = vector.broadcast %178 : f32 to vector<1x256xf32>
    %182 = arith.mulf %181, %74 : vector<1x256xf32>
    %183 = arith.addf %180, %182 : vector<1x256xf32>
    %184 = arith.addf %168, %183 : vector<1x256xf32>
    %c10 = arith.constant 10 : index
    %185 = memref.load %arg5[%c10] : memref<98xf32, #tpu.memory_space<smem>>
    %c59 = arith.constant 59 : index
    %186 = memref.load %arg5[%c59] : memref<98xf32, #tpu.memory_space<smem>>
    %187 = vector.broadcast %185 : f32 to vector<1x256xf32>
    %188 = arith.mulf %187, %55 : vector<1x256xf32>
    %189 = vector.broadcast %186 : f32 to vector<1x256xf32>
    %190 = arith.mulf %189, %56 : vector<1x256xf32>
    %191 = arith.addf %188, %190 : vector<1x256xf32>
    %192 = arith.addf %176, %191 : vector<1x256xf32>
    %c11 = arith.constant 11 : index
    %193 = memref.load %arg5[%c11] : memref<98xf32, #tpu.memory_space<smem>>
    %c60 = arith.constant 60 : index
    %194 = memref.load %arg5[%c60] : memref<98xf32, #tpu.memory_space<smem>>
    %195 = vector.broadcast %193 : f32 to vector<1x256xf32>
    %196 = arith.mulf %195, %78 : vector<1x256xf32>
    %197 = vector.broadcast %194 : f32 to vector<1x256xf32>
    %198 = arith.mulf %197, %80 : vector<1x256xf32>
    %199 = arith.addf %196, %198 : vector<1x256xf32>
    %200 = arith.addf %184, %199 : vector<1x256xf32>
    %c12 = arith.constant 12 : index
    %201 = memref.load %arg5[%c12] : memref<98xf32, #tpu.memory_space<smem>>
    %c61 = arith.constant 61 : index
    %202 = memref.load %arg5[%c61] : memref<98xf32, #tpu.memory_space<smem>>
    %203 = vector.broadcast %201 : f32 to vector<1x256xf32>
    %204 = arith.mulf %203, %84 : vector<1x256xf32>
    %205 = vector.broadcast %202 : f32 to vector<1x256xf32>
    %206 = arith.mulf %205, %86 : vector<1x256xf32>
    %207 = arith.addf %204, %206 : vector<1x256xf32>
    %208 = arith.addf %192, %207 : vector<1x256xf32>
    %c13 = arith.constant 13 : index
    %209 = memref.load %arg5[%c13] : memref<98xf32, #tpu.memory_space<smem>>
    %c62 = arith.constant 62 : index
    %210 = memref.load %arg5[%c62] : memref<98xf32, #tpu.memory_space<smem>>
    %211 = vector.broadcast %209 : f32 to vector<1x256xf32>
    %212 = arith.mulf %211, %90 : vector<1x256xf32>
    %213 = vector.broadcast %210 : f32 to vector<1x256xf32>
    %214 = arith.mulf %213, %92 : vector<1x256xf32>
    %215 = arith.addf %212, %214 : vector<1x256xf32>
    %216 = arith.addf %200, %215 : vector<1x256xf32>
    %217 = arith.addf %216, %208 : vector<1x256xf32>
    %c0_51 = arith.constant 0 : index
    %c1_52 = arith.constant 1 : index
    %c0_53 = arith.constant 0 : index
    %218 = vector.load %arg4[%c0_51, %c1_52, %c0_53] : memref<2x7x256xf32, #tpu.memory_space<vmem>>, vector<1x1x256xf32>
    %219 = vector.shape_cast %218 : vector<1x1x256xf32> to vector<1x256xf32>
    %c32_i32 = arith.constant 32 : i32
    %220 = tpu.dynamic_rotate %217 by %c32_i32 dim 1 : vector<1x256xf32>, i32 -> vector<1x256xf32>
    %221 = arith.mulf %220, %219 : vector<1x256xf32>
    %222 = arith.addf %94, %221 : vector<1x256xf32>
    %cst_54 = arith.constant 0.000000e+00 : f32
    %223 = vector.broadcast %cst_54 : f32 to vector<1x256xf32>
    %cst_55 = arith.constant 0.000000e+00 : f32
    %224 = vector.broadcast %cst_55 : f32 to vector<1x256xf32>
    %c14 = arith.constant 14 : index
    %225 = memref.load %arg5[%c14] : memref<98xf32, #tpu.memory_space<smem>>
    %c63 = arith.constant 63 : index
    %226 = memref.load %arg5[%c63] : memref<98xf32, #tpu.memory_space<smem>>
    %227 = vector.broadcast %225 : f32 to vector<1x256xf32>
    %228 = arith.mulf %227, %60 : vector<1x256xf32>
    %229 = vector.broadcast %226 : f32 to vector<1x256xf32>
    %230 = arith.mulf %229, %62 : vector<1x256xf32>
    %231 = arith.addf %228, %230 : vector<1x256xf32>
    %232 = arith.addf %223, %231 : vector<1x256xf32>
    %c15 = arith.constant 15 : index
    %233 = memref.load %arg5[%c15] : memref<98xf32, #tpu.memory_space<smem>>
    %c64 = arith.constant 64 : index
    %234 = memref.load %arg5[%c64] : memref<98xf32, #tpu.memory_space<smem>>
    %235 = vector.broadcast %233 : f32 to vector<1x256xf32>
    %236 = arith.mulf %235, %66 : vector<1x256xf32>
    %237 = vector.broadcast %234 : f32 to vector<1x256xf32>
    %238 = arith.mulf %237, %68 : vector<1x256xf32>
    %239 = arith.addf %236, %238 : vector<1x256xf32>
    %240 = arith.addf %224, %239 : vector<1x256xf32>
    %c16 = arith.constant 16 : index
    %241 = memref.load %arg5[%c16] : memref<98xf32, #tpu.memory_space<smem>>
    %c65 = arith.constant 65 : index
    %242 = memref.load %arg5[%c65] : memref<98xf32, #tpu.memory_space<smem>>
    %243 = vector.broadcast %241 : f32 to vector<1x256xf32>
    %244 = arith.mulf %243, %72 : vector<1x256xf32>
    %245 = vector.broadcast %242 : f32 to vector<1x256xf32>
    %246 = arith.mulf %245, %74 : vector<1x256xf32>
    %247 = arith.addf %244, %246 : vector<1x256xf32>
    %248 = arith.addf %232, %247 : vector<1x256xf32>
    %c17 = arith.constant 17 : index
    %249 = memref.load %arg5[%c17] : memref<98xf32, #tpu.memory_space<smem>>
    %c66 = arith.constant 66 : index
    %250 = memref.load %arg5[%c66] : memref<98xf32, #tpu.memory_space<smem>>
    %251 = vector.broadcast %249 : f32 to vector<1x256xf32>
    %252 = arith.mulf %251, %55 : vector<1x256xf32>
    %253 = vector.broadcast %250 : f32 to vector<1x256xf32>
    %254 = arith.mulf %253, %56 : vector<1x256xf32>
    %255 = arith.addf %252, %254 : vector<1x256xf32>
    %256 = arith.addf %240, %255 : vector<1x256xf32>
    %c18 = arith.constant 18 : index
    %257 = memref.load %arg5[%c18] : memref<98xf32, #tpu.memory_space<smem>>
    %c67 = arith.constant 67 : index
    %258 = memref.load %arg5[%c67] : memref<98xf32, #tpu.memory_space<smem>>
    %259 = vector.broadcast %257 : f32 to vector<1x256xf32>
    %260 = arith.mulf %259, %78 : vector<1x256xf32>
    %261 = vector.broadcast %258 : f32 to vector<1x256xf32>
    %262 = arith.mulf %261, %80 : vector<1x256xf32>
    %263 = arith.addf %260, %262 : vector<1x256xf32>
    %264 = arith.addf %248, %263 : vector<1x256xf32>
    %c19 = arith.constant 19 : index
    %265 = memref.load %arg5[%c19] : memref<98xf32, #tpu.memory_space<smem>>
    %c68 = arith.constant 68 : index
    %266 = memref.load %arg5[%c68] : memref<98xf32, #tpu.memory_space<smem>>
    %267 = vector.broadcast %265 : f32 to vector<1x256xf32>
    %268 = arith.mulf %267, %84 : vector<1x256xf32>
    %269 = vector.broadcast %266 : f32 to vector<1x256xf32>
    %270 = arith.mulf %269, %86 : vector<1x256xf32>
    %271 = arith.addf %268, %270 : vector<1x256xf32>
    %272 = arith.addf %256, %271 : vector<1x256xf32>
    %c20 = arith.constant 20 : index
    %273 = memref.load %arg5[%c20] : memref<98xf32, #tpu.memory_space<smem>>
    %c69 = arith.constant 69 : index
    %274 = memref.load %arg5[%c69] : memref<98xf32, #tpu.memory_space<smem>>
    %275 = vector.broadcast %273 : f32 to vector<1x256xf32>
    %276 = arith.mulf %275, %90 : vector<1x256xf32>
    %277 = vector.broadcast %274 : f32 to vector<1x256xf32>
    %278 = arith.mulf %277, %92 : vector<1x256xf32>
    %279 = arith.addf %276, %278 : vector<1x256xf32>
    %280 = arith.addf %264, %279 : vector<1x256xf32>
    %281 = arith.addf %280, %272 : vector<1x256xf32>
    %c0_56 = arith.constant 0 : index
    %c2_57 = arith.constant 2 : index
    %c0_58 = arith.constant 0 : index
    %282 = vector.load %arg4[%c0_56, %c2_57, %c0_58] : memref<2x7x256xf32, #tpu.memory_space<vmem>>, vector<1x1x256xf32>
    %283 = vector.shape_cast %282 : vector<1x1x256xf32> to vector<1x256xf32>
    %c16_i32 = arith.constant 16 : i32
    %284 = tpu.dynamic_rotate %281 by %c16_i32 dim 1 : vector<1x256xf32>, i32 -> vector<1x256xf32>
    %285 = arith.mulf %284, %283 : vector<1x256xf32>
    %286 = arith.addf %158, %285 : vector<1x256xf32>
    %cst_59 = arith.constant 0.000000e+00 : f32
    %287 = vector.broadcast %cst_59 : f32 to vector<1x256xf32>
    %cst_60 = arith.constant 0.000000e+00 : f32
    %288 = vector.broadcast %cst_60 : f32 to vector<1x256xf32>
    %c21 = arith.constant 21 : index
    %289 = memref.load %arg5[%c21] : memref<98xf32, #tpu.memory_space<smem>>
    %c70 = arith.constant 70 : index
    %290 = memref.load %arg5[%c70] : memref<98xf32, #tpu.memory_space<smem>>
    %291 = vector.broadcast %289 : f32 to vector<1x256xf32>
    %292 = arith.mulf %291, %60 : vector<1x256xf32>
    %293 = vector.broadcast %290 : f32 to vector<1x256xf32>
    %294 = arith.mulf %293, %62 : vector<1x256xf32>
    %295 = arith.addf %292, %294 : vector<1x256xf32>
    %296 = arith.addf %287, %295 : vector<1x256xf32>
    %c22 = arith.constant 22 : index
    %297 = memref.load %arg5[%c22] : memref<98xf32, #tpu.memory_space<smem>>
    %c71 = arith.constant 71 : index
    %298 = memref.load %arg5[%c71] : memref<98xf32, #tpu.memory_space<smem>>
    %299 = vector.broadcast %297 : f32 to vector<1x256xf32>
    %300 = arith.mulf %299, %66 : vector<1x256xf32>
    %301 = vector.broadcast %298 : f32 to vector<1x256xf32>
    %302 = arith.mulf %301, %68 : vector<1x256xf32>
    %303 = arith.addf %300, %302 : vector<1x256xf32>
    %304 = arith.addf %288, %303 : vector<1x256xf32>
    %c23 = arith.constant 23 : index
    %305 = memref.load %arg5[%c23] : memref<98xf32, #tpu.memory_space<smem>>
    %c72 = arith.constant 72 : index
    %306 = memref.load %arg5[%c72] : memref<98xf32, #tpu.memory_space<smem>>
    %307 = vector.broadcast %305 : f32 to vector<1x256xf32>
    %308 = arith.mulf %307, %72 : vector<1x256xf32>
    %309 = vector.broadcast %306 : f32 to vector<1x256xf32>
    %310 = arith.mulf %309, %74 : vector<1x256xf32>
    %311 = arith.addf %308, %310 : vector<1x256xf32>
    %312 = arith.addf %296, %311 : vector<1x256xf32>
    %c24 = arith.constant 24 : index
    %313 = memref.load %arg5[%c24] : memref<98xf32, #tpu.memory_space<smem>>
    %c73 = arith.constant 73 : index
    %314 = memref.load %arg5[%c73] : memref<98xf32, #tpu.memory_space<smem>>
    %315 = vector.broadcast %313 : f32 to vector<1x256xf32>
    %316 = arith.mulf %315, %55 : vector<1x256xf32>
    %317 = vector.broadcast %314 : f32 to vector<1x256xf32>
    %318 = arith.mulf %317, %56 : vector<1x256xf32>
    %319 = arith.addf %316, %318 : vector<1x256xf32>
    %320 = arith.addf %304, %319 : vector<1x256xf32>
    %c25 = arith.constant 25 : index
    %321 = memref.load %arg5[%c25] : memref<98xf32, #tpu.memory_space<smem>>
    %c74 = arith.constant 74 : index
    %322 = memref.load %arg5[%c74] : memref<98xf32, #tpu.memory_space<smem>>
    %323 = vector.broadcast %321 : f32 to vector<1x256xf32>
    %324 = arith.mulf %323, %78 : vector<1x256xf32>
    %325 = vector.broadcast %322 : f32 to vector<1x256xf32>
    %326 = arith.mulf %325, %80 : vector<1x256xf32>
    %327 = arith.addf %324, %326 : vector<1x256xf32>
    %328 = arith.addf %312, %327 : vector<1x256xf32>
    %c26 = arith.constant 26 : index
    %329 = memref.load %arg5[%c26] : memref<98xf32, #tpu.memory_space<smem>>
    %c75 = arith.constant 75 : index
    %330 = memref.load %arg5[%c75] : memref<98xf32, #tpu.memory_space<smem>>
    %331 = vector.broadcast %329 : f32 to vector<1x256xf32>
    %332 = arith.mulf %331, %84 : vector<1x256xf32>
    %333 = vector.broadcast %330 : f32 to vector<1x256xf32>
    %334 = arith.mulf %333, %86 : vector<1x256xf32>
    %335 = arith.addf %332, %334 : vector<1x256xf32>
    %336 = arith.addf %320, %335 : vector<1x256xf32>
    %c27 = arith.constant 27 : index
    %337 = memref.load %arg5[%c27] : memref<98xf32, #tpu.memory_space<smem>>
    %c76 = arith.constant 76 : index
    %338 = memref.load %arg5[%c76] : memref<98xf32, #tpu.memory_space<smem>>
    %339 = vector.broadcast %337 : f32 to vector<1x256xf32>
    %340 = arith.mulf %339, %90 : vector<1x256xf32>
    %341 = vector.broadcast %338 : f32 to vector<1x256xf32>
    %342 = arith.mulf %341, %92 : vector<1x256xf32>
    %343 = arith.addf %340, %342 : vector<1x256xf32>
    %344 = arith.addf %328, %343 : vector<1x256xf32>
    %345 = arith.addf %344, %336 : vector<1x256xf32>
    %346 = arith.addf %222, %345 : vector<1x256xf32>
    %cst_61 = arith.constant 0.000000e+00 : f32
    %347 = vector.broadcast %cst_61 : f32 to vector<1x256xf32>
    %cst_62 = arith.constant 0.000000e+00 : f32
    %348 = vector.broadcast %cst_62 : f32 to vector<1x256xf32>
    %c28 = arith.constant 28 : index
    %349 = memref.load %arg5[%c28] : memref<98xf32, #tpu.memory_space<smem>>
    %c77 = arith.constant 77 : index
    %350 = memref.load %arg5[%c77] : memref<98xf32, #tpu.memory_space<smem>>
    %351 = vector.broadcast %349 : f32 to vector<1x256xf32>
    %352 = arith.mulf %351, %60 : vector<1x256xf32>
    %353 = vector.broadcast %350 : f32 to vector<1x256xf32>
    %354 = arith.mulf %353, %62 : vector<1x256xf32>
    %355 = arith.addf %352, %354 : vector<1x256xf32>
    %356 = arith.addf %347, %355 : vector<1x256xf32>
    %c29 = arith.constant 29 : index
    %357 = memref.load %arg5[%c29] : memref<98xf32, #tpu.memory_space<smem>>
    %c78 = arith.constant 78 : index
    %358 = memref.load %arg5[%c78] : memref<98xf32, #tpu.memory_space<smem>>
    %359 = vector.broadcast %357 : f32 to vector<1x256xf32>
    %360 = arith.mulf %359, %66 : vector<1x256xf32>
    %361 = vector.broadcast %358 : f32 to vector<1x256xf32>
    %362 = arith.mulf %361, %68 : vector<1x256xf32>
    %363 = arith.addf %360, %362 : vector<1x256xf32>
    %364 = arith.addf %348, %363 : vector<1x256xf32>
    %c30 = arith.constant 30 : index
    %365 = memref.load %arg5[%c30] : memref<98xf32, #tpu.memory_space<smem>>
    %c79 = arith.constant 79 : index
    %366 = memref.load %arg5[%c79] : memref<98xf32, #tpu.memory_space<smem>>
    %367 = vector.broadcast %365 : f32 to vector<1x256xf32>
    %368 = arith.mulf %367, %72 : vector<1x256xf32>
    %369 = vector.broadcast %366 : f32 to vector<1x256xf32>
    %370 = arith.mulf %369, %74 : vector<1x256xf32>
    %371 = arith.addf %368, %370 : vector<1x256xf32>
    %372 = arith.addf %356, %371 : vector<1x256xf32>
    %c31 = arith.constant 31 : index
    %373 = memref.load %arg5[%c31] : memref<98xf32, #tpu.memory_space<smem>>
    %c80 = arith.constant 80 : index
    %374 = memref.load %arg5[%c80] : memref<98xf32, #tpu.memory_space<smem>>
    %375 = vector.broadcast %373 : f32 to vector<1x256xf32>
    %376 = arith.mulf %375, %55 : vector<1x256xf32>
    %377 = vector.broadcast %374 : f32 to vector<1x256xf32>
    %378 = arith.mulf %377, %56 : vector<1x256xf32>
    %379 = arith.addf %376, %378 : vector<1x256xf32>
    %380 = arith.addf %364, %379 : vector<1x256xf32>
    %c32 = arith.constant 32 : index
    %381 = memref.load %arg5[%c32] : memref<98xf32, #tpu.memory_space<smem>>
    %c81 = arith.constant 81 : index
    %382 = memref.load %arg5[%c81] : memref<98xf32, #tpu.memory_space<smem>>
    %383 = vector.broadcast %381 : f32 to vector<1x256xf32>
    %384 = arith.mulf %383, %78 : vector<1x256xf32>
    %385 = vector.broadcast %382 : f32 to vector<1x256xf32>
    %386 = arith.mulf %385, %80 : vector<1x256xf32>
    %387 = arith.addf %384, %386 : vector<1x256xf32>
    %388 = arith.addf %372, %387 : vector<1x256xf32>
    %c33 = arith.constant 33 : index
    %389 = memref.load %arg5[%c33] : memref<98xf32, #tpu.memory_space<smem>>
    %c82 = arith.constant 82 : index
    %390 = memref.load %arg5[%c82] : memref<98xf32, #tpu.memory_space<smem>>
    %391 = vector.broadcast %389 : f32 to vector<1x256xf32>
    %392 = arith.mulf %391, %84 : vector<1x256xf32>
    %393 = vector.broadcast %390 : f32 to vector<1x256xf32>
    %394 = arith.mulf %393, %86 : vector<1x256xf32>
    %395 = arith.addf %392, %394 : vector<1x256xf32>
    %396 = arith.addf %380, %395 : vector<1x256xf32>
    %c34 = arith.constant 34 : index
    %397 = memref.load %arg5[%c34] : memref<98xf32, #tpu.memory_space<smem>>
    %c83 = arith.constant 83 : index
    %398 = memref.load %arg5[%c83] : memref<98xf32, #tpu.memory_space<smem>>
    %399 = vector.broadcast %397 : f32 to vector<1x256xf32>
    %400 = arith.mulf %399, %90 : vector<1x256xf32>
    %401 = vector.broadcast %398 : f32 to vector<1x256xf32>
    %402 = arith.mulf %401, %92 : vector<1x256xf32>
    %403 = arith.addf %400, %402 : vector<1x256xf32>
    %404 = arith.addf %388, %403 : vector<1x256xf32>
    %405 = arith.addf %404, %396 : vector<1x256xf32>
    %c0_63 = arith.constant 0 : index
    %c4_64 = arith.constant 4 : index
    %c0_65 = arith.constant 0 : index
    %406 = vector.load %arg4[%c0_63, %c4_64, %c0_65] : memref<2x7x256xf32, #tpu.memory_space<vmem>>, vector<1x1x256xf32>
    %407 = vector.shape_cast %406 : vector<1x1x256xf32> to vector<1x256xf32>
    %c240_i32 = arith.constant 240 : i32
    %408 = tpu.dynamic_rotate %405 by %c240_i32 dim 1 : vector<1x256xf32>, i32 -> vector<1x256xf32>
    %409 = arith.mulf %408, %407 : vector<1x256xf32>
    %410 = arith.addf %286, %409 : vector<1x256xf32>
    %cst_66 = arith.constant 0.000000e+00 : f32
    %411 = vector.broadcast %cst_66 : f32 to vector<1x256xf32>
    %cst_67 = arith.constant 0.000000e+00 : f32
    %412 = vector.broadcast %cst_67 : f32 to vector<1x256xf32>
    %c35 = arith.constant 35 : index
    %413 = memref.load %arg5[%c35] : memref<98xf32, #tpu.memory_space<smem>>
    %c84 = arith.constant 84 : index
    %414 = memref.load %arg5[%c84] : memref<98xf32, #tpu.memory_space<smem>>
    %415 = vector.broadcast %413 : f32 to vector<1x256xf32>
    %416 = arith.mulf %415, %60 : vector<1x256xf32>
    %417 = vector.broadcast %414 : f32 to vector<1x256xf32>
    %418 = arith.mulf %417, %62 : vector<1x256xf32>
    %419 = arith.addf %416, %418 : vector<1x256xf32>
    %420 = arith.addf %411, %419 : vector<1x256xf32>
    %c36 = arith.constant 36 : index
    %421 = memref.load %arg5[%c36] : memref<98xf32, #tpu.memory_space<smem>>
    %c85 = arith.constant 85 : index
    %422 = memref.load %arg5[%c85] : memref<98xf32, #tpu.memory_space<smem>>
    %423 = vector.broadcast %421 : f32 to vector<1x256xf32>
    %424 = arith.mulf %423, %66 : vector<1x256xf32>
    %425 = vector.broadcast %422 : f32 to vector<1x256xf32>
    %426 = arith.mulf %425, %68 : vector<1x256xf32>
    %427 = arith.addf %424, %426 : vector<1x256xf32>
    %428 = arith.addf %412, %427 : vector<1x256xf32>
    %c37 = arith.constant 37 : index
    %429 = memref.load %arg5[%c37] : memref<98xf32, #tpu.memory_space<smem>>
    %c86 = arith.constant 86 : index
    %430 = memref.load %arg5[%c86] : memref<98xf32, #tpu.memory_space<smem>>
    %431 = vector.broadcast %429 : f32 to vector<1x256xf32>
    %432 = arith.mulf %431, %72 : vector<1x256xf32>
    %433 = vector.broadcast %430 : f32 to vector<1x256xf32>
    %434 = arith.mulf %433, %74 : vector<1x256xf32>
    %435 = arith.addf %432, %434 : vector<1x256xf32>
    %436 = arith.addf %420, %435 : vector<1x256xf32>
    %c38 = arith.constant 38 : index
    %437 = memref.load %arg5[%c38] : memref<98xf32, #tpu.memory_space<smem>>
    %c87 = arith.constant 87 : index
    %438 = memref.load %arg5[%c87] : memref<98xf32, #tpu.memory_space<smem>>
    %439 = vector.broadcast %437 : f32 to vector<1x256xf32>
    %440 = arith.mulf %439, %55 : vector<1x256xf32>
    %441 = vector.broadcast %438 : f32 to vector<1x256xf32>
    %442 = arith.mulf %441, %56 : vector<1x256xf32>
    %443 = arith.addf %440, %442 : vector<1x256xf32>
    %444 = arith.addf %428, %443 : vector<1x256xf32>
    %c39 = arith.constant 39 : index
    %445 = memref.load %arg5[%c39] : memref<98xf32, #tpu.memory_space<smem>>
    %c88 = arith.constant 88 : index
    %446 = memref.load %arg5[%c88] : memref<98xf32, #tpu.memory_space<smem>>
    %447 = vector.broadcast %445 : f32 to vector<1x256xf32>
    %448 = arith.mulf %447, %78 : vector<1x256xf32>
    %449 = vector.broadcast %446 : f32 to vector<1x256xf32>
    %450 = arith.mulf %449, %80 : vector<1x256xf32>
    %451 = arith.addf %448, %450 : vector<1x256xf32>
    %452 = arith.addf %436, %451 : vector<1x256xf32>
    %c40 = arith.constant 40 : index
    %453 = memref.load %arg5[%c40] : memref<98xf32, #tpu.memory_space<smem>>
    %c89 = arith.constant 89 : index
    %454 = memref.load %arg5[%c89] : memref<98xf32, #tpu.memory_space<smem>>
    %455 = vector.broadcast %453 : f32 to vector<1x256xf32>
    %456 = arith.mulf %455, %84 : vector<1x256xf32>
    %457 = vector.broadcast %454 : f32 to vector<1x256xf32>
    %458 = arith.mulf %457, %86 : vector<1x256xf32>
    %459 = arith.addf %456, %458 : vector<1x256xf32>
    %460 = arith.addf %444, %459 : vector<1x256xf32>
    %c41 = arith.constant 41 : index
    %461 = memref.load %arg5[%c41] : memref<98xf32, #tpu.memory_space<smem>>
    %c90 = arith.constant 90 : index
    %462 = memref.load %arg5[%c90] : memref<98xf32, #tpu.memory_space<smem>>
    %463 = vector.broadcast %461 : f32 to vector<1x256xf32>
    %464 = arith.mulf %463, %90 : vector<1x256xf32>
    %465 = vector.broadcast %462 : f32 to vector<1x256xf32>
    %466 = arith.mulf %465, %92 : vector<1x256xf32>
    %467 = arith.addf %464, %466 : vector<1x256xf32>
    %468 = arith.addf %452, %467 : vector<1x256xf32>
    %469 = arith.addf %468, %460 : vector<1x256xf32>
    %c0_68 = arith.constant 0 : index
    %c5_69 = arith.constant 5 : index
    %c0_70 = arith.constant 0 : index
    %470 = vector.load %arg4[%c0_68, %c5_69, %c0_70] : memref<2x7x256xf32, #tpu.memory_space<vmem>>, vector<1x1x256xf32>
    %471 = vector.shape_cast %470 : vector<1x1x256xf32> to vector<1x256xf32>
    %c224_i32 = arith.constant 224 : i32
    %472 = tpu.dynamic_rotate %469 by %c224_i32 dim 1 : vector<1x256xf32>, i32 -> vector<1x256xf32>
    %473 = arith.mulf %472, %471 : vector<1x256xf32>
    %474 = arith.addf %346, %473 : vector<1x256xf32>
    %cst_71 = arith.constant 0.000000e+00 : f32
    %475 = vector.broadcast %cst_71 : f32 to vector<1x256xf32>
    %cst_72 = arith.constant 0.000000e+00 : f32
    %476 = vector.broadcast %cst_72 : f32 to vector<1x256xf32>
    %c42 = arith.constant 42 : index
    %477 = memref.load %arg5[%c42] : memref<98xf32, #tpu.memory_space<smem>>
    %c91 = arith.constant 91 : index
    %478 = memref.load %arg5[%c91] : memref<98xf32, #tpu.memory_space<smem>>
    %479 = vector.broadcast %477 : f32 to vector<1x256xf32>
    %480 = arith.mulf %479, %60 : vector<1x256xf32>
    %481 = vector.broadcast %478 : f32 to vector<1x256xf32>
    %482 = arith.mulf %481, %62 : vector<1x256xf32>
    %483 = arith.addf %480, %482 : vector<1x256xf32>
    %484 = arith.addf %475, %483 : vector<1x256xf32>
    %c43 = arith.constant 43 : index
    %485 = memref.load %arg5[%c43] : memref<98xf32, #tpu.memory_space<smem>>
    %c92 = arith.constant 92 : index
    %486 = memref.load %arg5[%c92] : memref<98xf32, #tpu.memory_space<smem>>
    %487 = vector.broadcast %485 : f32 to vector<1x256xf32>
    %488 = arith.mulf %487, %66 : vector<1x256xf32>
    %489 = vector.broadcast %486 : f32 to vector<1x256xf32>
    %490 = arith.mulf %489, %68 : vector<1x256xf32>
    %491 = arith.addf %488, %490 : vector<1x256xf32>
    %492 = arith.addf %476, %491 : vector<1x256xf32>
    %c44 = arith.constant 44 : index
    %493 = memref.load %arg5[%c44] : memref<98xf32, #tpu.memory_space<smem>>
    %c93 = arith.constant 93 : index
    %494 = memref.load %arg5[%c93] : memref<98xf32, #tpu.memory_space<smem>>
    %495 = vector.broadcast %493 : f32 to vector<1x256xf32>
    %496 = arith.mulf %495, %72 : vector<1x256xf32>
    %497 = vector.broadcast %494 : f32 to vector<1x256xf32>
    %498 = arith.mulf %497, %74 : vector<1x256xf32>
    %499 = arith.addf %496, %498 : vector<1x256xf32>
    %500 = arith.addf %484, %499 : vector<1x256xf32>
    %c45 = arith.constant 45 : index
    %501 = memref.load %arg5[%c45] : memref<98xf32, #tpu.memory_space<smem>>
    %c94 = arith.constant 94 : index
    %502 = memref.load %arg5[%c94] : memref<98xf32, #tpu.memory_space<smem>>
    %503 = vector.broadcast %501 : f32 to vector<1x256xf32>
    %504 = arith.mulf %503, %55 : vector<1x256xf32>
    %505 = vector.broadcast %502 : f32 to vector<1x256xf32>
    %506 = arith.mulf %505, %56 : vector<1x256xf32>
    %507 = arith.addf %504, %506 : vector<1x256xf32>
    %508 = arith.addf %492, %507 : vector<1x256xf32>
    %c46 = arith.constant 46 : index
    %509 = memref.load %arg5[%c46] : memref<98xf32, #tpu.memory_space<smem>>
    %c95 = arith.constant 95 : index
    %510 = memref.load %arg5[%c95] : memref<98xf32, #tpu.memory_space<smem>>
    %511 = vector.broadcast %509 : f32 to vector<1x256xf32>
    %512 = arith.mulf %511, %78 : vector<1x256xf32>
    %513 = vector.broadcast %510 : f32 to vector<1x256xf32>
    %514 = arith.mulf %513, %80 : vector<1x256xf32>
    %515 = arith.addf %512, %514 : vector<1x256xf32>
    %516 = arith.addf %500, %515 : vector<1x256xf32>
    %c47 = arith.constant 47 : index
    %517 = memref.load %arg5[%c47] : memref<98xf32, #tpu.memory_space<smem>>
    %c96 = arith.constant 96 : index
    %518 = memref.load %arg5[%c96] : memref<98xf32, #tpu.memory_space<smem>>
    %519 = vector.broadcast %517 : f32 to vector<1x256xf32>
    %520 = arith.mulf %519, %84 : vector<1x256xf32>
    %521 = vector.broadcast %518 : f32 to vector<1x256xf32>
    %522 = arith.mulf %521, %86 : vector<1x256xf32>
    %523 = arith.addf %520, %522 : vector<1x256xf32>
    %524 = arith.addf %508, %523 : vector<1x256xf32>
    %c48 = arith.constant 48 : index
    %525 = memref.load %arg5[%c48] : memref<98xf32, #tpu.memory_space<smem>>
    %c97 = arith.constant 97 : index
    %526 = memref.load %arg5[%c97] : memref<98xf32, #tpu.memory_space<smem>>
    %527 = vector.broadcast %525 : f32 to vector<1x256xf32>
    %528 = arith.mulf %527, %90 : vector<1x256xf32>
    %529 = vector.broadcast %526 : f32 to vector<1x256xf32>
    %530 = arith.mulf %529, %92 : vector<1x256xf32>
    %531 = arith.addf %528, %530 : vector<1x256xf32>
    %532 = arith.addf %516, %531 : vector<1x256xf32>
    %533 = arith.addf %532, %524 : vector<1x256xf32>
    %c0_73 = arith.constant 0 : index
    %c6_74 = arith.constant 6 : index
    %c0_75 = arith.constant 0 : index
    %534 = vector.load %arg4[%c0_73, %c6_74, %c0_75] : memref<2x7x256xf32, #tpu.memory_space<vmem>>, vector<1x1x256xf32>
    %535 = vector.shape_cast %534 : vector<1x1x256xf32> to vector<1x256xf32>
    %c208_i32 = arith.constant 208 : i32
    %536 = tpu.dynamic_rotate %533 by %c208_i32 dim 1 : vector<1x256xf32>, i32 -> vector<1x256xf32>
    %537 = arith.mulf %536, %535 : vector<1x256xf32>
    %538 = arith.addf %410, %537 : vector<1x256xf32>
    %539 = arith.addf %538, %474 : vector<1x256xf32>
    %540 = arith.negf %539 : vector<1x256xf32>
    %541 = math.exp %540 : vector<1x256xf32>
    %cst_76 = arith.constant 1.000000e+00 : f32
    %542 = vector.broadcast %cst_76 : f32 to vector<1x256xf32>
    %543 = arith.addf %542, %541 : vector<1x256xf32>
    %544 = arith.divf %542, %543 : vector<1x256xf32>
    %545 = vector.shape_cast %49 : vector<1x32xf32> to vector<1x32x1xf32>
    %546 = vector.broadcast %545 : vector<1x32x1xf32> to vector<1x32x256xf32>
    %547 = arith.mulf %0, %546 : vector<1x32x256xf32>
    %548 = vector.shape_cast %544 : vector<1x256xf32> to vector<1x1x256xf32>
    %549 = vector.broadcast %548 : vector<1x1x256xf32> to vector<1x32x256xf32>
    %550 = arith.mulf %547, %549 : vector<1x32x256xf32>
    %c0_77 = arith.constant 0 : index
    %c0_78 = arith.constant 0 : index
    %c0_79 = arith.constant 0 : index
    %551 = vector.load %arg6[%c0_77, %c0_78, %c0_79] : memref<1x32x256xf32, #tpu.memory_space<vmem>>, vector<1x32x256xf32>
    tpu.vector_store %arg6[%c0_77, %c0_78, %c0_79], %550 {strides = array<i32>} : memref<1x32x256xf32, #tpu.memory_space<vmem>>, vector<1x32x256xf32>,
    return
  }
  func.func @transform_0(%arg0: i32) -> (i32, i32, i32) {
    %c0_i32 = arith.constant 0 : i32
    %c0_i32_0 = arith.constant 0 : i32
    %c0_i32_1 = arith.constant 0 : i32
    return %arg0, %c0_i32, %c0_i32_0 : i32, i32, i32
  }
  func.func @transform_1(%arg0: i32) -> (i32, i32) {
    %c0_i32 = arith.constant 0 : i32
    %c0_i32_0 = arith.constant 0 : i32
    %c0_i32_1 = arith.constant 0 : i32
    return %c0_i32, %c0_i32_0 : i32, i32
  }
  func.func @transform_2(%arg0: i32) -> (i32, i32) {
    %c0_i32 = arith.constant 0 : i32
    %c0_i32_0 = arith.constant 0 : i32
    %c0_i32_1 = arith.constant 0 : i32
    return %c0_i32, %c0_i32_0 : i32, i32
  }
  func.func @transform_3(%arg0: i32) -> (i32, i32, i32) {
    %c0_i32 = arith.constant 0 : i32
    %c0_i32_0 = arith.constant 0 : i32
    %c0_i32_1 = arith.constant 0 : i32
    %c0_i32_2 = arith.constant 0 : i32
    return %c0_i32, %c0_i32_0, %c0_i32_1 : i32, i32, i32
  }
  func.func @transform_4(%arg0: i32) -> i32 {
    %c0_i32 = arith.constant 0 : i32
    %c0_i32_0 = arith.constant 0 : i32
    return %c0_i32 : i32
  }
  func.func @transform_5(%arg0: i32) -> (i32, i32, i32) {
    %c0_i32 = arith.constant 0 : i32
    %c0_i32_0 = arith.constant 0 : i32
    %c0_i32_1 = arith.constant 0 : i32
    return %arg0, %c0_i32, %c0_i32_0 : i32, i32, i32
  }
}

</mosaic_0001>

<llo_original>
// kernel: tpu_custom_call.1
$region0: #{tpu_custom_call.1}
  #allocation0 [shape = 'u32[]', space=smem, size = 0x4, offset = 0x4, fixed_abs, tag = 'smem constant byte address 0x4 - core index']
  #allocation1 [shape = 'u32[144,128]{1,0:T(1,128)}', space=vmem, size = 0x12000, scoped, tag = 'internal scratch']
  %s0 = inlined_call_operand.hbm [shape: f32[2,32,256], index: 0, kind: input, shape index: {}]
  %s1 = inlined_call_operand.vmem [shape: f32[2,32], index: 1, kind: input, shape index: {}]
  %s2 = inlined_call_operand.vmem [shape: f32[2,32], index: 2, kind: input, shape index: {}]
  %s3 = inlined_call_operand.vmem [shape: f32[2,7,256], index: 3, kind: input, shape index: {}]
  %s4 = inlined_call_operand.vmem [shape: f32[98], index: 4, kind: input, shape index: {}]
  %s5 = inlined_call_operand.hbm [shape: f32[2,32,256], index: 5, kind: output, shape index: {}]
  %s6 = sld [smem:[#allocation0]]
  $region61: #{tpu_custom_call.1} parent=0
    _
  %s8 = ssub.s32 1, %s6
  %s9 = scalar_select 0, %s8, %s6
  $region1: #{tpu_custom_call.1} parent=0
    #allocation2 [shape = 'u8[65536]{0}', space=vmem, size = 0x10000, scoped, tag = 'input window, operand 0']
    #allocation3 [shape = 's32[2]{0}', space=sflag, size = 0x8, scoped, tag = 'scoped memory for tpu_custom_call.1']
    #allocation4 [shape = 's32[2]{0}', space=sflag, size = 0x8, scoped, tag = 'scoped memory for tpu_custom_call.1']
    #allocation5 [shape = 's32[2]{0}', space=sflag, size = 0x8, scoped, tag = 'scoped memory for tpu_custom_call.1']
    #allocation6 [shape = 'u8[512]{0}', space=smem, size = 0x200, scoped, tag = 'input window, operand 4, single buffered']
    #allocation7 [shape = 'u8[65536]{0}', space=vmem, size = 0x10000, scoped, tag = 'output window, operand 0']
    %10 = vsyncpa [#allocation3], 0
    %s11 = scalar_lea.sflag [#allocation3], 1
    %12 = vsyncpa %s11, 0
    %13 = vsyncpa [#allocation5], 0
    %14 = vsyncpa [#allocation4], 0
    %s15 = scalar_lea.sflag [#allocation4], 1
    %16 = vsyncpa %s15, 0
    loop: start=0, step=1, limit=4
    $region2: #{tpu_custom_call.1} parent=1 // loop_pre_header
      _
    $region3: #{tpu_custom_call.1} parent=1 // loop_header
      %s18 = sphi 0, %s22
      %p19 = scmp.ge.s32.totalorder %s18, 4
      %s28 = sphi 0, %s30
      %s31 = sphi 0, %s28
      %s32 = sphi 0, %s31
      %s48 = sphi 0, %s32
      %s52 = sphi 0, %s52
      %s54 = sphi 0, %s52
      %s55 = sphi 0, %s54
      %s69 = sphi 0, %s55
      %s73 = sphi 0, %s73
      %s75 = sphi 0, %s73
      %s76 = sphi 0, %s75
      %s90 = sphi 0, %s76
      %s94 = sphi 0, %s94
      %s96 = sphi 0, %s94
      %s97 = sphi 0, %s96
      %s111 = sphi 0, %s97
      %s115 = sphi 0, %s115
      %s117 = sphi 0, %s115
      %s118 = sphi 0, %s117
      %s132 = sphi 0, %s118
      %s138 = sphi 0, %s140
      %s141 = sphi 0, %s138
      %s142 = sphi 0, %s141
      %s158 = sphi 0, %s142
    $region4: #{tpu_custom_call.1} parent=1 // loop_header_branch
      %21 = sbr.rel (%p19) target = $region8
    $region5: #{tpu_custom_call.1} parent=1 // loop_body
      %s23 = ssub.s32 %s18, 1
      %s24 = ssub.s32 %s18, 2
      %s25 = sadd.s32 %s18, 1
      %s26 = ssub.s32 %s18, %s25
      %p27 = scmp.eq.s32.totalorder %s26, 0
      %s29 = sadd.s32 %s28, 1
      %s30 = scalar_select %p27, %s28, %s29
      %p33 = pneg %p27
      %p34 = scmp.eq.s32.totalorder %s18, 1
      %p35 = por %p33, %p34
      %p36 = scmp.ne.s32.totalorder %s28, %s31
      %p37 = scmp.eq.s32.totalorder %s18, 0
      %p38 = por %p36, %p37
      %p39 = scmp.ne.s32.totalorder %s28, %s31
      %p40 = scmp.eq.s32.totalorder %s23, 1
      %p41 = por %p39, %p40
      %p42 = scmp.ne.s32.totalorder %s31, %s32
      %p43 = scmp.eq.s32.totalorder %s23, 0
      %p44 = por %p42, %p43
      %p45 = scmp.ne.s32.totalorder %s31, %s32
      %p46 = scmp.eq.s32.totalorder %s24, 1
      %p47 = por %p45, %p46
      %p49 = scmp.ne.s32.totalorder %s32, %s48
      %p50 = scmp.eq.s32.totalorder %s24, 0
      %p51 = por %p49, %p50
      %s53 = sadd.s32 %s52, 1
      %p56 = scmp.eq.s32.totalorder %s18, 1
      %p57 = scmp.ne.s32.totalorder %s52, %s54
      %p58 = scmp.eq.s32.totalorder %s18, 0
      %p59 = por %p57, %p58
      %p60 = scmp.ne.s32.totalorder %s52, %s54
      %p61 = scmp.eq.s32.totalorder %s23, 1
      %p62 = por %p60, %p61
      %p63 = scmp.ne.s32.totalorder %s54, %s55
      %p64 = scmp.eq.s32.totalorder %s23, 0
      %p65 = por %p63, %p64
      %p66 = scmp.ne.s32.totalorder %s54, %s55
      %p67 = scmp.eq.s32.totalorder %s24, 1
      %p68 = por %p66, %p67
      %p70 = scmp.ne.s32.totalorder %s55, %s69
      %p71 = scmp.eq.s32.totalorder %s24, 0
      %p72 = por %p70, %p71
      %s74 = sadd.s32 %s73, 1
      %p77 = scmp.eq.s32.totalorder %s18, 1
      %p78 = scmp.ne.s32.totalorder %s73, %s75
      %p79 = scmp.eq.s32.totalorder %s18, 0
      %p80 = por %p78, %p79
      %p81 = scmp.ne.s32.totalorder %s73, %s75
      %p82 = scmp.eq.s32.totalorder %s23, 1
      %p83 = por %p81, %p82
      %p84 = scmp.ne.s32.totalorder %s75, %s76
      %p85 = scmp.eq.s32.totalorder %s23, 0
      %p86 = por %p84, %p85
      %p87 = scmp.ne.s32.totalorder %s75, %s76
      %p88 = scmp.eq.s32.totalorder %s24, 1
      %p89 = por %p87, %p88
      %p91 = scmp.ne.s32.totalorder %s76, %s90
      %p92 = scmp.eq.s32.totalorder %s24, 0
      %p93 = por %p91, %p92
      %s95 = sadd.s32 %s94, 1
      %p98 = scmp.eq.s32.totalorder %s18, 1
      %p99 = scmp.ne.s32.totalorder %s94, %s96
      %p100 = scmp.eq.s32.totalorder %s18, 0
      %p101 = por %p99, %p100
      %p102 = scmp.ne.s32.totalorder %s94, %s96
      %p103 = scmp.eq.s32.totalorder %s23, 1
      %p104 = por %p102, %p103
      %p105 = scmp.ne.s32.totalorder %s96, %s97
      %p106 = scmp.eq.s32.totalorder %s23, 0
      %p107 = por %p105, %p106
      %p108 = scmp.ne.s32.totalorder %s96, %s97
      %p109 = scmp.eq.s32.totalorder %s24, 1
      %p110 = por %p108, %p109
      %p112 = scmp.ne.s32.totalorder %s97, %s111
      %p113 = scmp.eq.s32.totalorder %s24, 0
      %p114 = por %p112, %p113
      %s116 = sadd.s32 %s115, 1
      %p119 = scmp.eq.s32.totalorder %s18, 1
      %p120 = scmp.ne.s32.totalorder %s115, %s117
      %p121 = scmp.eq.s32.totalorder %s18, 0
      %p122 = por %p120, %p121
      %p123 = scmp.ne.s32.totalorder %s115, %s117
      %p124 = scmp.eq.s32.totalorder %s23, 1
      %p125 = por %p123, %p124
      %p126 = scmp.ne.s32.totalorder %s117, %s118
      %p127 = scmp.eq.s32.totalorder %s23, 0
      %p128 = por %p126, %p127
      %p129 = scmp.ne.s32.totalorder %s117, %s118
      %p130 = scmp.eq.s32.totalorder %s24, 1
      %p131 = por %p129, %p130
      %p133 = scmp.ne.s32.totalorder %s118, %s132
      %p134 = scmp.eq.s32.totalorder %s24, 0
      %p135 = por %p133, %p134
      %s136 = ssub.s32 %s18, %s25
      %p137 = scmp.eq.s32.totalorder %s136, 0
      %s139 = sadd.s32 %s138, 1
      %s140 = scalar_select %p137, %s138, %s139
      %p143 = pneg %p137
      %p144 = scmp.eq.s32.totalorder %s18, 1
      %p145 = por %p143, %p144
      %p146 = scmp.ne.s32.totalorder %s138, %s141
      %p147 = scmp.eq.s32.totalorder %s18, 0
      %p148 = por %p146, %p147
      %p149 = scmp.ne.s32.totalorder %s138, %s141
      %p150 = scmp.eq.s32.totalorder %s23, 1
      %p151 = por %p149, %p150
      %p152 = scmp.ne.s32.totalorder %s141, %s142
      %p153 = scmp.eq.s32.totalorder %s23, 0
      %p154 = por %p152, %p153
      %p155 = scmp.ne.s32.totalorder %s141, %s142
      %p156 = scmp.eq.s32.totalorder %s24, 1
      %p157 = por %p155, %p156
      %p159 = scmp.ne.s32.totalorder %s142, %s158
      %p160 = scmp.eq.s32.totalorder %s24, 0
      %p161 = por %p159, %p160
      %p162 = scmp.le.s32.totalorder 1, %s18
      %p163 = scmp.lt.s32.totalorder %s18, 3
      %p164 = pnand %p162, %p163
      %p165 = pneg %p164
      // Predicated region
      $region9: #{tpu_custom_call.1} parent=5 // pred_check
        _
      $region10: #{tpu_custom_call.1} parent=5 // pred_check_branch
        %167 = sbr.rel (%p164) target = $region12
      $region11: #{tpu_custom_call.1} parent=5 // pred_region
        %s168 = ssub.s32 %s18, 1
        // Predicated region
        $region13: #{tpu_custom_call.1} parent=11 // pred_check
          %p169 = pneg %p65
        $region14: #{tpu_custom_call.1} parent=11 // pred_check_branch
          %171 = sbr.rel (%p169) target = $region16
        $region15: #{tpu_custom_call.1} parent=11 // pred_region
          _
        $region16: #{tpu_custom_call.1} parent=11 // pred_fallthru
          _
        // Predicated region
        $region17: #{tpu_custom_call.1} parent=11 // pred_check
          %p172 = pneg %p86
        $region18: #{tpu_custom_call.1} parent=11 // pred_check_branch
          %174 = sbr.rel (%p172) target = $region20
        $region19: #{tpu_custom_call.1} parent=11 // pred_region
          _
        $region20: #{tpu_custom_call.1} parent=11 // pred_fallthru
          _
        // Predicated region
        $region21: #{tpu_custom_call.1} parent=11 // pred_check
          %p175 = pneg %p107
        $region22: #{tpu_custom_call.1} parent=11 // pred_check_branch
          %177 = sbr.rel (%p175) target = $region24
        $region23: #{tpu_custom_call.1} parent=11 // pred_region
          _
        $region24: #{tpu_custom_call.1} parent=11 // pred_fallthru
          _
        // Predicated region
        $region25: #{tpu_custom_call.1} parent=11 // pred_check
          %p178 = pneg %p128
        $region26: #{tpu_custom_call.1} parent=11 // pred_check_branch
          %180 = sbr.rel (%p178) target = $region28
        $region27: #{tpu_custom_call.1} parent=11 // pred_region
          %s182 = ssub.s32 16, 16
          %183 = vsyncadd [#allocation5], %s182
          %s185 = sshll.u32 %s4, 4
          %s186 = int_to_ptr.vmem [resolvable:$true] %s185
          %188 = dma.vmem_to_smem %s186, 16, [#allocation6], [#allocation5]
        $region28: #{tpu_custom_call.1} parent=11 // pred_fallthru
          _
      $region12: #{tpu_custom_call.1} parent=5 // pred_fallthru
        _
      %p189 = scmp.lt.s32.totalorder %s18, 2
      // Predicated region
      $region29: #{tpu_custom_call.1} parent=5 // pred_check
        %p190 = pneg %p189
      $region30: #{tpu_custom_call.1} parent=5 // pred_check_branch
        %192 = sbr.rel (%p190) target = $region32
      $region31: #{tpu_custom_call.1} parent=5 // pred_region
        // Predicated region
        $region33: #{tpu_custom_call.1} parent=31 // pred_check
          %p193 = pneg %p38
        $region34: #{tpu_custom_call.1} parent=31 // pred_check_branch
          %195 = sbr.rel (%p193) target = $region36
        $region35: #{tpu_custom_call.1} parent=31 // pred_region
          %s196 = sand.u32 %s28, 1
          %s197 = scalar_lea.sflag [#allocation3], %s196
          %s198 = sand.u32 %s28, 1
          %s199 = smul.addr %s198, 64
          %s200 = scalar_lea.vmem [#allocation2], %s199
          %s202 = ssub.s32 1024, 1024
          %203 = vsyncadd %s197, %s202
          %s204 = smul.addr %s18, 8
          %s205 = smul.addr %s204, 128
          %s206 = scalar_lea.hbm %s0, %s205
          %s207 = sshll.u32 %s200, 4
          %s208 = int_to_ptr.vmem [resolvable:$true] %s207
          %213 = dma.hbm_to_vmem [thread:$0]  %s206, 1024, %s208, %s197, 256, 256, 16
        $region36: #{tpu_custom_call.1} parent=31 // pred_fallthru
          _
      $region32: #{tpu_custom_call.1} parent=5 // pred_fallthru
        _
      %p214 = scmp.le.s32.totalorder 1, %s18
      %p215 = scmp.lt.s32.totalorder %s18, 3
      %p216 = pnand %p214, %p215
      %p217 = pneg %p216
      // Predicated region
      $region37: #{tpu_custom_call.1} parent=5 // pred_check
        _
      $region38: #{tpu_custom_call.1} parent=5 // pred_check_branch
        %219 = sbr.rel (%p216) target = $region40
      $region39: #{tpu_custom_call.1} parent=5 // pred_region
        %s220 = ssub.s32 %s18, 1
        %s221 = sand.u32 %s31, 1
        %s222 = scalar_lea.sflag [#allocation3], %s221
        %s223 = sand.u32 %s31, 1
        %s224 = smul.addr %s223, 64
        %s225 = scalar_lea.vmem [#allocation2], %s224
        // Predicated region
        $region41: #{tpu_custom_call.1} parent=39 // pred_check
          %p226 = pneg %p44
        $region42: #{tpu_custom_call.1} parent=39 // pred_check_branch
          %228 = sbr.rel (%p226) target = $region44
        $region43: #{tpu_custom_call.1} parent=39 // pred_region
          %229 = dma.done %s222, 1024
        $region44: #{tpu_custom_call.1} parent=39 // pred_fallthru
          _
        // Predicated region
        $region45: #{tpu_custom_call.1} parent=39 // pred_check
          %p230 = pneg %p128
        $region46: #{tpu_custom_call.1} parent=39 // pred_check_branch
          %232 = sbr.rel (%p230) target = $region48
        $region47: #{tpu_custom_call.1} parent=39 // pred_region
          %233 = dma.done [#allocation5], 16
        $region48: #{tpu_custom_call.1} parent=39 // pred_fallthru
          _
        %234 = sfence
        %s235 = sand.u32 %s31, 1
        %s236 = scalar_lea.sflag [#allocation3], %s235
        %s237 = sand.u32 %s31, 1
        %s238 = smul.addr %s237, 64
        %s239 = scalar_lea.vmem [#allocation2], %s238
        %p240 = pneg %p44
        %p241 = pneg %p41
        %p242 = pneg %p65
        %p243 = pneg %p62
        %p244 = pneg %p86
        %p245 = pneg %p83
        %p246 = pneg %p107
        %p247 = pneg %p104
        %p248 = pneg %p128
        %p249 = pneg %p125
        %p250 = pneg %p154
        %p251 = pneg %p151
        %s252 = sand.u32 %s141, 1
        %s253 = scalar_lea.sflag [#allocation4], %s252
        %s254 = sand.u32 %s141, 1
        %s255 = smul.addr %s254, 64
        %s256 = scalar_lea.vmem [#allocation7], %s255
        %v257 = vld [vmem:[%s225] sm:$0xff]
        %v258 = vld [vmem:[%s225 + $0x8] sm:$0xff]
        %v259 = vld [vmem:[%s225 + $0x10] sm:$0xff]
        %v260 = vld [vmem:[%s225 + $0x18] sm:$0xff]
        %v261 = vld [vmem:[%s225 + $0x20] sm:$0xff]
        %v262 = vld [vmem:[%s225 + $0x28] sm:$0xff]
        %v263 = vld [vmem:[%s225 + $0x30] sm:$0xff]
        %v264 = vld [vmem:[%s225 + $0x38] sm:$0xff]
        %v265 = vadd.f32 %v257, %v258
        %266 = vadd.xlane.f32.xlu0 %v265
        %v267 = vpop.xlane.xlu0 %266
        %v268 = vadd.f32 %v259, %v260
        %269 = vadd.xlane.f32.xlu0 %v268
        %v270 = vpop.xlane.xlu0 %269
        %v271 = vadd.f32 %v261, %v262
        %272 = vadd.xlane.f32.xlu0 %v271
        %v273 = vpop.xlane.xlu0 %272
        %v274 = vadd.f32 %v263, %v264
        %275 = vadd.xlane.f32.xlu0 %v274
        %v276 = vpop.xlane.xlu0 %275
        %v277 = vmul.f32 %v267, 0.00390625
        %v278 = vmul.f32 %v270, 0.00390625
        %v279 = vmul.f32 %v273, 0.00390625
        %v280 = vmul.f32 %v276, 0.00390625
        %v281 = vmax.f32 %v257, %v258
        %282 = vmax.xlane.f32.xlu0 %v281
        %v283 = vpop.xlane.xlu0 %282
        %v284 = vmax.f32 %v259, %v260
        %285 = vmax.xlane.f32.xlu0 %v284
        %v286 = vpop.xlane.xlu0 %285
        %v287 = vmax.f32 %v261, %v262
        %288 = vmax.xlane.f32.xlu0 %v287
        %v289 = vpop.xlane.xlu0 %288
        %v290 = vmax.f32 %v263, %v264
        %291 = vmax.xlane.f32.xlu0 %v290
        %v292 = vpop.xlane.xlu0 %291
        %v297 = vlaneseq
        %v298 = vand.u32 %v297, 127
        %v299 = vlaneseq
        %v300 = vshrl.u32 %v299, 7
        %v301 = vsub.s32 %v298, %v300
        %v302 = vrot.slane %v277, %v301
        %v303 = vadd.s32 %v298, 4294967288
        %v304 = vlaneseq
        %v305 = vshrl.u32 %v304, 7
        %v306 = vsub.s32 %v303, %v305
        %v307 = vrot.slane %v278, %v306
        %vm308 = vcmask 130112
        %v309 = vsel %vm308, %v307, %v302
        %v310 = vadd.s32 %v298, 4294967280
        %v311 = vlaneseq
        %v312 = vshrl.u32 %v311, 7
        %v313 = vsub.s32 %v310, %v312
        %v314 = vrot.slane %v279, %v313
        %vm315 = vcmask 195712
        %v316 = vsel %vm315, %v314, %v309
        %v317 = vadd.s32 %v298, 4294967272
        %v318 = vlaneseq
        %v319 = vshrl.u32 %v318, 7
        %v320 = vsub.s32 %v317, %v319
        %v321 = vrot.slane %v280, %v320
        %vm322 = vcmask 261312
        %v323 = vsel %vm322, %v321, %v316
        %v329 = vlaneseq
        %v330 = vshrl.u32 %v329, 7
        %v331 = vsub.s32 %v298, %v330
        %v332 = vrot.slane %v283, %v331
        %v333 = vlaneseq
        %v334 = vshrl.u32 %v333, 7
        %v335 = vsub.s32 %v303, %v334
        %v336 = vrot.slane %v286, %v335
        %v337 = vsel %vm308, %v336, %v332
        %v338 = vlaneseq
        %v339 = vshrl.u32 %v338, 7
        %v340 = vsub.s32 %v310, %v339
        %v341 = vrot.slane %v289, %v340
        %v342 = vsel %vm315, %v341, %v337
        %v343 = vlaneseq
        %v344 = vshrl.u32 %v343, 7
        %v345 = vsub.s32 %v317, %v344
        %v346 = vrot.slane %v292, %v345
        %v347 = vsel %vm322, %v346, %v342
        %vm349 = vcmask 1040384
        %v350 = vsel %vm349, %v323, %v347
        %v351 = vld [vmem:[%s1] sm:$0x3]
        %v352 = vld [vmem:[%s2] sm:$0x3]
        %v353 = vlaneseq
        %v354 = vshrl.u32 %v353, 7
        %v355 = vsub.s32 0, %v354
        %v356 = vrot.slane %v351, %v355
        %v357 = vmul.f32 %v350, %v356
        %vm358 = vcmask 254976
        %v359 = vsel %vm358, %v357, 0.0
        %360 = vadd.xlane.f32.xlu0 %v359
        %v361 = vpop.xlane.xlu0 %360
        %v362 = vmax.f32 %v361, 0.0
        %v364 = vrot.slane %v362, 1
        %v366 = vadd.f32 %v362, %v364
        %368 = vset.pattern.permute.xlu0 0
        %369 = vperm.xlu0 %368, %v366
        %v370 = vpop.permute.xlu0 %369
        %v372 = vmul.f32 %v370, %v352
        %v373 = vadd.f32 %v372, 0.0
        %v374 = vlaneseq
        %v375 = vshrl.u32 %v374, 7
        %v376 = vsub.s32 1, %v375
        %v377 = vrot.slane %v351, %v376
        %v378 = vmul.f32 %v350, %v377
        %v379 = vsel %vm358, %v378, 0.0
        %380 = vadd.xlane.f32.xlu0 %v379
        %v381 = vpop.xlane.xlu0 %380
        %v382 = vmax.f32 %v381, 0.0
        %v384 = vrot.slane %v382, 1
        %v386 = vadd.f32 %v382, %v384
        %388 = vset.pattern.permute.xlu0 0
        %389 = vperm.xlu0 %388, %v386
        %v390 = vpop.permute.xlu0 %389
        %v393 = vrot.slane %v352, 1
        %v395 = vmul.f32 %v390, %v393
        %v396 = vadd.f32 %v373, %v395
        %v397 = vxor.u32 %v396, 2147483648
        %v398 = vmul.f32 %v397, 1.442695
        %v399 = vpow.pop %v398
        %v400 = vadd.f32 %v399, 1.0
        %v401 = vrcp.pop %v400
        %v402 = vmul.f32 1.0, %v401
        %v403 = vlaneseq
        %v404 = vshrl.u32 %v403, 7
        %v405 = vsub.s32 0, %v404
        %v406 = vrot.slane %v402, %v405
        %408 = vbcast.lane.b32.xlu0 %v406, 256
        %v409 = vpop.permute.xlu0 %408
        %s411 = sor.u32 256, 8
        %412 = vbcast.lane.b32.xlu0 %v406, %s411
        %v413 = vpop.permute.xlu0 %412
        %s415 = sor.u32 256, 16
        %416 = vbcast.lane.b32.xlu0 %v406, %s415
        %v417 = vpop.permute.xlu0 %416
        %s419 = sor.u32 256, 24
        %420 = vbcast.lane.b32.xlu0 %v406, %s419
        %v421 = vpop.permute.xlu0 %420
        %v422 = vmul.f32 %v257, %v409
        %v423 = vmul.f32 %v258, %v409
        %v424 = vmul.f32 %v259, %v413
        %v425 = vmul.f32 %v260, %v413
        %v426 = vmul.f32 %v261, %v417
        %v427 = vmul.f32 %v262, %v417
        %v428 = vmul.f32 %v263, %v421
        %v429 = vmul.f32 %v264, %v421
        %v430 = vadd.f32 %v422, %v424
        %v431 = vadd.f32 %v430, %v426
        %v432 = vadd.f32 %v431, %v428
        %v433 = vrot.slane %v432, 4
        %v434 = vadd.f32 %v432, %v433
        %v435 = vrot.slane %v434, 2
        %v436 = vadd.f32 %v434, %v435
        %v437 = vrot.slane %v436, 1
        %v438 = vadd.f32 %v436, %v437
        %v439 = vadd.f32 %v423, %v425
        %v440 = vadd.f32 %v439, %v427
        %v441 = vadd.f32 %v440, %v429
        %v442 = vrot.slane %v441, 4
        %v443 = vadd.f32 %v441, %v442
        %v444 = vrot.slane %v443, 2
        %v445 = vadd.f32 %v443, %v444
        %v446 = vrot.slane %v445, 1
        %v447 = vadd.f32 %v445, %v446
        %v448 = vmul.f32 %v438, 0.03125
        %v449 = vmul.f32 %v447, 0.03125
        %v450 = vmax.f32 %v422, %v426
        %v451 = vmax.f32 %v424, %v428
        %v452 = vmax.f32 %v450, %v451
        %v453 = vrot.slane %v452, 4
        %v454 = vmax.f32 %v452, %v453
        %v455 = vrot.slane %v454, 2
        %v456 = vmax.f32 %v454, %v455
        %v457 = vrot.slane %v456, 1
        %v458 = vmax.f32 %v456, %v457
        %v459 = vmax.f32 %v423, %v427
        %v460 = vmax.f32 %v425, %v429
        %v461 = vmax.f32 %v459, %v460
        %v462 = vrot.slane %v461, 4
        %v463 = vmax.f32 %v461, %v462
        %v464 = vrot.slane %v463, 2
        %v465 = vmax.f32 %v463, %v464
        %v466 = vrot.slane %v465, 1
        %v467 = vmax.f32 %v465, %v466
        %s468 = scalar_lea.vmem %s3, 16
        %v469 = vld [vmem:[%s468] ss:$8 sm:$0x3]
        %470 = vrot.lane.b32.xlu0 %v448, 3
        %v471 = vpop.permute.xlu0 %470
        %472 = vrot.lane.b32.xlu0 %v449, 3
        %v473 = vpop.permute.xlu0 %472
        %vm474 = vcmp.lt.s32.totalorder %v298, 3
        %v475 = vsel %vm474, %v471, %v473
        %v476 = vsel %vm474, %v473, %v471
        %v478 = vlaneseq
        %v479 = vshrl.u32 %v478, 7
        %v480 = vsub.s32 0, %v479
        %v481 = vrot.slane %v469, %v480
        %v482 = vlaneseq
        %v483 = vshrl.u32 %v482, 7
        %v484 = vsub.s32 1, %v483
        %v485 = vrot.slane %v469, %v484
        %v488 = vmul.f32 %v476, %v481
        %v489 = vmul.f32 %v475, %v485
        %490 = vrot.lane.b32.xlu0 %v458, 3
        %v491 = vpop.permute.xlu0 %490
        %492 = vrot.lane.b32.xlu0 %v467, 3
        %v493 = vpop.permute.xlu0 %492
        %v494 = vsel %vm474, %v491, %v493
        %v495 = vsel %vm474, %v493, %v491
        %v496 = vmul.f32 %v495, %v481
        %v497 = vmul.f32 %v494, %v485
        %s498 = scalar_lea.vmem %s468, 1
        %v499 = vld [vmem:[%s498] ss:$8 sm:$0x3]
        %500 = vrot.lane.b32.xlu0 %v448, 2
        %v501 = vpop.permute.xlu0 %500
        %502 = vrot.lane.b32.xlu0 %v449, 2
        %v503 = vpop.permute.xlu0 %502
        %vm504 = vcmp.lt.s32.totalorder %v298, 2
        %v505 = vsel %vm504, %v501, %v503
        %v506 = vsel %vm504, %v503, %v501
        %v508 = vlaneseq
        %v509 = vshrl.u32 %v508, 7
        %v510 = vsub.s32 0, %v509
        %v511 = vrot.slane %v499, %v510
        %v512 = vlaneseq
        %v513 = vshrl.u32 %v512, 7
        %v514 = vsub.s32 1, %v513
        %v515 = vrot.slane %v499, %v514
        %v518 = vmul.f32 %v506, %v511
        %v519 = vmul.f32 %v505, %v515
        %520 = vrot.lane.b32.xlu0 %v458, 2
        %v521 = vpop.permute.xlu0 %520
        %522 = vrot.lane.b32.xlu0 %v467, 2
        %v523 = vpop.permute.xlu0 %522
        %v524 = vsel %vm504, %v521, %v523
        %v525 = vsel %vm504, %v523, %v521
        %v526 = vmul.f32 %v525, %v511
        %v527 = vmul.f32 %v524, %v515
        %s528 = scalar_lea.vmem %s468, 2
        %v529 = vld [vmem:[%s528] ss:$8 sm:$0x3]
        %530 = vrot.lane.b32.xlu0 %v448, 1
        %v531 = vpop.permute.xlu0 %530
        %532 = vrot.lane.b32.xlu0 %v449, 1
        %v533 = vpop.permute.xlu0 %532
        %vm534 = vcmp.lt.s32.totalorder %v298, 1
        %v535 = vsel %vm534, %v531, %v533
        %v536 = vsel %vm534, %v533, %v531
        %v538 = vlaneseq
        %v539 = vshrl.u32 %v538, 7
        %v540 = vsub.s32 0, %v539
        %v541 = vrot.slane %v529, %v540
        %v542 = vlaneseq
        %v543 = vshrl.u32 %v542, 7
        %v544 = vsub.s32 1, %v543
        %v545 = vrot.slane %v529, %v544
        %v548 = vmul.f32 %v536, %v541
        %v549 = vmul.f32 %v535, %v545
        %550 = vrot.lane.b32.xlu0 %v458, 1
        %v551 = vpop.permute.xlu0 %550
        %552 = vrot.lane.b32.xlu0 %v467, 1
        %v553 = vpop.permute.xlu0 %552
        %v554 = vsel %vm534, %v551, %v553
        %v555 = vsel %vm534, %v553, %v551
        %v556 = vmul.f32 %v555, %v541
        %v557 = vmul.f32 %v554, %v545
        %s558 = scalar_lea.vmem %s468, 4
        %v559 = vld [vmem:[%s558] ss:$8 sm:$0x3]
        %560 = vrot.lane.b32.xlu0 %v448, 127
        %v561 = vpop.permute.xlu0 %560
        %562 = vrot.lane.b32.xlu0 %v449, 127
        %v563 = vpop.permute.xlu0 %562
        %vm564 = vcmp.lt.s32.totalorder %v298, 127
        %v565 = vsel %vm564, %v561, %v563
        %v566 = vsel %vm564, %v563, %v561
        %v568 = vlaneseq
        %v569 = vshrl.u32 %v568, 7
        %v570 = vsub.s32 0, %v569
        %v571 = vrot.slane %v559, %v570
        %v572 = vlaneseq
        %v573 = vshrl.u32 %v572, 7
        %v574 = vsub.s32 1, %v573
        %v575 = vrot.slane %v559, %v574
        %v578 = vmul.f32 %v565, %v571
        %v579 = vmul.f32 %v566, %v575
        %580 = vrot.lane.b32.xlu0 %v458, 127
        %v581 = vpop.permute.xlu0 %580
        %582 = vrot.lane.b32.xlu0 %v467, 127
        %v583 = vpop.permute.xlu0 %582
        %v584 = vsel %vm564, %v581, %v583
        %v585 = vsel %vm564, %v583, %v581
        %v586 = vmul.f32 %v584, %v571
        %v587 = vmul.f32 %v585, %v575
        %s588 = scalar_lea.vmem %s468, 5
        %v589 = vld [vmem:[%s588] ss:$8 sm:$0x3]
        %590 = vrot.lane.b32.xlu0 %v448, 126
        %v591 = vpop.permute.xlu0 %590
        %592 = vrot.lane.b32.xlu0 %v449, 126
        %v593 = vpop.permute.xlu0 %592
        %vm594 = vcmp.lt.s32.totalorder %v298, 126
        %v595 = vsel %vm594, %v591, %v593
        %v596 = vsel %vm594, %v593, %v591
        %v598 = vlaneseq
        %v599 = vshrl.u32 %v598, 7
        %v600 = vsub.s32 0, %v599
        %v601 = vrot.slane %v589, %v600
        %v602 = vlaneseq
        %v603 = vshrl.u32 %v602, 7
        %v604 = vsub.s32 1, %v603
        %v605 = vrot.slane %v589, %v604
        %v608 = vmul.f32 %v595, %v601
        %v609 = vmul.f32 %v596, %v605
        %610 = vrot.lane.b32.xlu0 %v458, 126
        %v611 = vpop.permute.xlu0 %610
        %612 = vrot.lane.b32.xlu0 %v467, 126
        %v613 = vpop.permute.xlu0 %612
        %v614 = vsel %vm594, %v611, %v613
        %v615 = vsel %vm594, %v613, %v611
        %v616 = vmul.f32 %v614, %v601
        %v617 = vmul.f32 %v615, %v605
        %s618 = scalar_lea.vmem %s468, 6
        %v619 = vld [vmem:[%s618] ss:$8 sm:$0x3]
        %620 = vrot.lane.b32.xlu0 %v448, 125
        %v621 = vpop.permute.xlu0 %620
        %622 = vrot.lane.b32.xlu0 %v449, 125
        %v623 = vpop.permute.xlu0 %622
        %vm624 = vcmp.lt.s32.totalorder %v298, 125
        %v625 = vsel %vm624, %v621, %v623
        %v626 = vsel %vm624, %v623, %v621
        %v628 = vlaneseq
        %v629 = vshrl.u32 %v628, 7
        %v630 = vsub.s32 0, %v629
        %v631 = vrot.slane %v619, %v630
        %v632 = vlaneseq
        %v633 = vshrl.u32 %v632, 7
        %v634 = vsub.s32 1, %v633
        %v635 = vrot.slane %v619, %v634
        %v638 = vmul.f32 %v625, %v631
        %v639 = vmul.f32 %v626, %v635
        %640 = vrot.lane.b32.xlu0 %v458, 125
        %v641 = vpop.permute.xlu0 %640
        %642 = vrot.lane.b32.xlu0 %v467, 125
        %v643 = vpop.permute.xlu0 %642
        %v644 = vsel %vm624, %v641, %v643
        %v645 = vsel %vm624, %v643, %v641
        %v646 = vmul.f32 %v644, %v631
        %v647 = vmul.f32 %v645, %v635
        %s648 = sld [smem:[#allocation6]]
        %s649 = sld [smem:[#allocation6 + $0x31]]
        %v650 = vstv %s648
        %v651 = vmul.f32 %v650, %v488
        %v652 = vmul.f32 %v650, %v489
        %v653 = vstv %s649
        %v654 = vmul.f32 %v653, %v496
        %v655 = vmul.f32 %v653, %v497
        %v656 = vadd.f32 %v651, %v654
        %v657 = vadd.f32 %v652, %v655
        %v658 = vadd.f32 %v656, 0.0
        %v659 = vadd.f32 %v657, 0.0
        %s660 = sld [smem:[#allocation6 + $0x1]]
        %s661 = sld [smem:[#allocation6 + $0x32]]
        %v662 = vstv %s660
        %v663 = vmul.f32 %v662, %v518
        %v664 = vmul.f32 %v662, %v519
        %v665 = vstv %s661
        %v666 = vmul.f32 %v665, %v526
        %v667 = vmul.f32 %v665, %v527
        %v668 = vadd.f32 %v663, %v666
        %v669 = vadd.f32 %v664, %v667
        %v670 = vadd.f32 %v668, 0.0
        %v671 = vadd.f32 %v669, 0.0
        %s672 = sld [smem:[#allocation6 + $0x2]]
        %s673 = sld [smem:[#allocation6 + $0x33]]
        %v674 = vstv %s672
        %v675 = vmul.f32 %v674, %v548
        %v676 = vmul.f32 %v674, %v549
        %v677 = vstv %s673
        %v678 = vmul.f32 %v677, %v556
        %v679 = vmul.f32 %v677, %v557
        %v680 = vadd.f32 %v675, %v678
        %v681 = vadd.f32 %v676, %v679
        %v682 = vadd.f32 %v658, %v680
        %v683 = vadd.f32 %v659, %v681
        %s684 = sld [smem:[#allocation6 + $0x3]]
        %s685 = sld [smem:[#allocation6 + $0x34]]
        %v686 = vstv %s684
        %v687 = vmul.f32 %v686, %v448
        %v688 = vmul.f32 %v686, %v449
        %v689 = vstv %s685
        %v690 = vmul.f32 %v689, %v458
        %v691 = vmul.f32 %v689, %v467
        %v692 = vadd.f32 %v687, %v690
        %v693 = vadd.f32 %v688, %v691
        %v694 = vadd.f32 %v670, %v692
        %v695 = vadd.f32 %v671, %v693
        %s696 = sld [smem:[#allocation6 + $0x4]]
        %s697 = sld [smem:[#allocation6 + $0x35]]
        %v698 = vstv %s696
        %v699 = vmul.f32 %v698, %v578
        %v700 = vmul.f32 %v698, %v579
        %v701 = vstv %s697
        %v702 = vmul.f32 %v701, %v586
        %v703 = vmul.f32 %v701, %v587
        %v704 = vadd.f32 %v699, %v702
        %v705 = vadd.f32 %v700, %v703
        %v706 = vadd.f32 %v682, %v704
        %v707 = vadd.f32 %v683, %v705
        %s708 = sld [smem:[#allocation6 + $0x5]]
        %s709 = sld [smem:[#allocation6 + $0x36]]
        %v710 = vstv %s708
        %v711 = vmul.f32 %v710, %v608
        %v712 = vmul.f32 %v710, %v609
        %v713 = vstv %s709
        %v714 = vmul.f32 %v713, %v616
        %v715 = vmul.f32 %v713, %v617
        %v716 = vadd.f32 %v711, %v714
        %v717 = vadd.f32 %v712, %v715
        %v718 = vadd.f32 %v694, %v716
        %v719 = vadd.f32 %v695, %v717
        %s720 = sld [smem:[#allocation6 + $0x6]]
        %s721 = sld [smem:[#allocation6 + $0x37]]
        %v722 = vstv %s720
        %v723 = vmul.f32 %v722, %v638
        %v724 = vmul.f32 %v722, %v639
        %v725 = vstv %s721
        %v726 = vmul.f32 %v725, %v646
        %v727 = vmul.f32 %v725, %v647
        %v728 = vadd.f32 %v723, %v726
        %v729 = vadd.f32 %v724, %v727
        %v730 = vadd.f32 %v706, %v728
        %v731 = vadd.f32 %v707, %v729
        %v732 = vadd.f32 %v730, %v718
        %v733 = vadd.f32 %v731, %v719
        %v734 = vld [vmem:[%s3] ss:$8 sm:$0x3]
        %735 = vrot.lane.b32.xlu0 %v732, 48
        %v736 = vpop.permute.xlu0 %735
        %737 = vrot.lane.b32.xlu0 %v733, 48
        %v738 = vpop.permute.xlu0 %737
        %vm739 = vcmp.lt.s32.totalorder %v298, 48
        %v740 = vsel %vm739, %v736, %v738
        %v741 = vsel %vm739, %v738, %v736
        %v743 = vlaneseq
        %v744 = vshrl.u32 %v743, 7
        %v745 = vsub.s32 0, %v744
        %v746 = vrot.slane %v734, %v745
        %v747 = vlaneseq
        %v748 = vshrl.u32 %v747, 7
        %v749 = vsub.s32 1, %v748
        %v750 = vrot.slane %v734, %v749
        %v753 = vmul.f32 %v741, %v746
        %v754 = vmul.f32 %v740, %v750
        %v755 = vadd.f32 %v753, 0.0
        %v756 = vadd.f32 %v754, 0.0
        %s757 = sld [smem:[#allocation6 + $0x7]]
        %s758 = sld [smem:[#allocation6 + $0x38]]
        %v759 = vstv %s757
        %v760 = vmul.f32 %v759, %v488
        %v761 = vmul.f32 %v759, %v489
        %v762 = vstv %s758
        %v763 = vmul.f32 %v762, %v496
        %v764 = vmul.f32 %v762, %v497
        %v765 = vadd.f32 %v760, %v763
        %v766 = vadd.f32 %v761, %v764
        %v767 = vadd.f32 %v765, 0.0
        %v768 = vadd.f32 %v766, 0.0
        %s769 = sld [smem:[#allocation6 + $0x8]]
        %s770 = sld [smem:[#allocation6 + $0x39]]
        %v771 = vstv %s769
        %v772 = vmul.f32 %v771, %v518
        %v773 = vmul.f32 %v771, %v519
        %v774 = vstv %s770
        %v775 = vmul.f32 %v774, %v526
        %v776 = vmul.f32 %v774, %v527
        %v777 = vadd.f32 %v772, %v775
        %v778 = vadd.f32 %v773, %v776
        %v779 = vadd.f32 %v777, 0.0
        %v780 = vadd.f32 %v778, 0.0
        %s781 = sld [smem:[#allocation6 + $0x9]]
        %s782 = sld [smem:[#allocation6 + $0x3a]]
        %v783 = vstv %s781
        %v784 = vmul.f32 %v783, %v548
        %v785 = vmul.f32 %v783, %v549
        %v786 = vstv %s782
        %v787 = vmul.f32 %v786, %v556
        %v788 = vmul.f32 %v786, %v557
        %v789 = vadd.f32 %v784, %v787
        %v790 = vadd.f32 %v785, %v788
        %v791 = vadd.f32 %v767, %v789
        %v792 = vadd.f32 %v768, %v790
        %s793 = sld [smem:[#allocation6 + $0xa]]
        %s794 = sld [smem:[#allocation6 + $0x3b]]
        %v795 = vstv %s793
        %v796 = vmul.f32 %v795, %v448
        %v797 = vmul.f32 %v795, %v449
        %v798 = vstv %s794
        %v799 = vmul.f32 %v798, %v458
        %v800 = vmul.f32 %v798, %v467
        %v801 = vadd.f32 %v796, %v799
        %v802 = vadd.f32 %v797, %v800
        %v803 = vadd.f32 %v779, %v801
        %v804 = vadd.f32 %v780, %v802
        %s805 = sld [smem:[#allocation6 + $0xb]]
        %s806 = sld [smem:[#allocation6 + $0x3c]]
        %v807 = vstv %s805
        %v808 = vmul.f32 %v807, %v578
        %v809 = vmul.f32 %v807, %v579
        %v810 = vstv %s806
        %v811 = vmul.f32 %v810, %v586
        %v812 = vmul.f32 %v810, %v587
        %v813 = vadd.f32 %v808, %v811
        %v814 = vadd.f32 %v809, %v812
        %v815 = vadd.f32 %v791, %v813
        %v816 = vadd.f32 %v792, %v814
        %s817 = sld [smem:[#allocation6 + $0xc]]
        %s818 = sld [smem:[#allocation6 + $0x3d]]
        %v819 = vstv %s817
        %v820 = vmul.f32 %v819, %v608
        %v821 = vmul.f32 %v819, %v609
        %v822 = vstv %s818
        %v823 = vmul.f32 %v822, %v616
        %v824 = vmul.f32 %v822, %v617
        %v825 = vadd.f32 %v820, %v823
        %v826 = vadd.f32 %v821, %v824
        %v827 = vadd.f32 %v803, %v825
        %v828 = vadd.f32 %v804, %v826
        %s829 = sld [smem:[#allocation6 + $0xd]]
        %s830 = sld [smem:[#allocation6 + $0x3e]]
        %v831 = vstv %s829
        %v832 = vmul.f32 %v831, %v638
        %v833 = vmul.f32 %v831, %v639
        %v834 = vstv %s830
        %v835 = vmul.f32 %v834, %v646
        %v836 = vmul.f32 %v834, %v647
        %v837 = vadd.f32 %v832, %v835
        %v838 = vadd.f32 %v833, %v836
        %v839 = vadd.f32 %v815, %v837
        %v840 = vadd.f32 %v816, %v838
        %v841 = vadd.f32 %v839, %v827
        %v842 = vadd.f32 %v840, %v828
        %s843 = scalar_lea.vmem %s3, 1
        %v844 = vld [vmem:[%s843] ss:$8 sm:$0x3]
        %845 = vrot.lane.b32.xlu0 %v841, 32
        %v846 = vpop.permute.xlu0 %845
        %847 = vrot.lane.b32.xlu0 %v842, 32
        %v848 = vpop.permute.xlu0 %847
        %vm849 = vcmp.lt.s32.totalorder %v298, 32
        %v850 = vsel %vm849, %v846, %v848
        %v851 = vsel %vm849, %v848, %v846
        %v853 = vlaneseq
        %v854 = vshrl.u32 %v853, 7
        %v855 = vsub.s32 0, %v854
        %v856 = vrot.slane %v844, %v855
        %v857 = vlaneseq
        %v858 = vshrl.u32 %v857, 7
        %v859 = vsub.s32 1, %v858
        %v860 = vrot.slane %v844, %v859
        %v863 = vmul.f32 %v851, %v856
        %v864 = vmul.f32 %v850, %v860
        %v865 = vadd.f32 %v863, 0.0
        %v866 = vadd.f32 %v864, 0.0
        %s867 = sld [smem:[#allocation6 + $0xe]]
        %s868 = sld [smem:[#allocation6 + $0x3f]]
        %v869 = vstv %s867
        %v870 = vmul.f32 %v869, %v488
        %v871 = vmul.f32 %v869, %v489
        %v872 = vstv %s868
        %v873 = vmul.f32 %v872, %v496
        %v874 = vmul.f32 %v872, %v497
        %v875 = vadd.f32 %v870, %v873
        %v876 = vadd.f32 %v871, %v874
        %v877 = vadd.f32 %v875, 0.0
        %v878 = vadd.f32 %v876, 0.0
        %s879 = sld [smem:[#allocation6 + $0xf]]
        %s880 = sld [smem:[#allocation6 + $0x40]]
        %v881 = vstv %s879
        %v882 = vmul.f32 %v881, %v518
        %v883 = vmul.f32 %v881, %v519
        %v884 = vstv %s880
        %v885 = vmul.f32 %v884, %v526
        %v886 = vmul.f32 %v884, %v527
        %v887 = vadd.f32 %v882, %v885
        %v888 = vadd.f32 %v883, %v886
        %v889 = vadd.f32 %v887, 0.0
        %v890 = vadd.f32 %v888, 0.0
        %s891 = sld [smem:[#allocation6 + $0x10]]
        %s892 = sld [smem:[#allocation6 + $0x41]]
        %v893 = vstv %s891
        %v894 = vmul.f32 %v893, %v548
        %v895 = vmul.f32 %v893, %v549
        %v896 = vstv %s892
        %v897 = vmul.f32 %v896, %v556
        %v898 = vmul.f32 %v896, %v557
        %v899 = vadd.f32 %v894, %v897
        %v900 = vadd.f32 %v895, %v898
        %v901 = vadd.f32 %v877, %v899
        %v902 = vadd.f32 %v878, %v900
        %s903 = sld [smem:[#allocation6 + $0x11]]
        %s904 = sld [smem:[#allocation6 + $0x42]]
        %v905 = vstv %s903
        %v906 = vmul.f32 %v905, %v448
        %v907 = vmul.f32 %v905, %v449
        %v908 = vstv %s904
        %v909 = vmul.f32 %v908, %v458
        %v910 = vmul.f32 %v908, %v467
        %v911 = vadd.f32 %v906, %v909
        %v912 = vadd.f32 %v907, %v910
        %v913 = vadd.f32 %v889, %v911
        %v914 = vadd.f32 %v890, %v912
        %s915 = sld [smem:[#allocation6 + $0x12]]
        %s916 = sld [smem:[#allocation6 + $0x43]]
        %v917 = vstv %s915
        %v918 = vmul.f32 %v917, %v578
        %v919 = vmul.f32 %v917, %v579
        %v920 = vstv %s916
        %v921 = vmul.f32 %v920, %v586
        %v922 = vmul.f32 %v920, %v587
        %v923 = vadd.f32 %v918, %v921
        %v924 = vadd.f32 %v919, %v922
        %v925 = vadd.f32 %v901, %v923
        %v926 = vadd.f32 %v902, %v924
        %s927 = sld [smem:[#allocation6 + $0x13]]
        %s928 = sld [smem:[#allocation6 + $0x44]]
        %v929 = vstv %s927
        %v930 = vmul.f32 %v929, %v608
        %v931 = vmul.f32 %v929, %v609
        %v932 = vstv %s928
        %v933 = vmul.f32 %v932, %v616
        %v934 = vmul.f32 %v932, %v617
        %v935 = vadd.f32 %v930, %v933
        %v936 = vadd.f32 %v931, %v934
        %v937 = vadd.f32 %v913, %v935
        %v938 = vadd.f32 %v914, %v936
        %s939 = sld [smem:[#allocation6 + $0x14]]
        %s940 = sld [smem:[#allocation6 + $0x45]]
        %v941 = vstv %s939
        %v942 = vmul.f32 %v941, %v638
        %v943 = vmul.f32 %v941, %v639
        %v944 = vstv %s940
        %v945 = vmul.f32 %v944, %v646
        %v946 = vmul.f32 %v944, %v647
        %v947 = vadd.f32 %v942, %v945
        %v948 = vadd.f32 %v943, %v946
        %v949 = vadd.f32 %v925, %v947
        %v950 = vadd.f32 %v926, %v948
        %v951 = vadd.f32 %v949, %v937
        %v952 = vadd.f32 %v950, %v938
        %s953 = scalar_lea.vmem %s3, 2
        %v954 = vld [vmem:[%s953] ss:$8 sm:$0x3]
        %955 = vrot.lane.b32.xlu0 %v951, 16
        %v956 = vpop.permute.xlu0 %955
        %957 = vrot.lane.b32.xlu0 %v952, 16
        %v958 = vpop.permute.xlu0 %957
        %vm959 = vcmp.lt.s32.totalorder %v298, 16
        %v960 = vsel %vm959, %v956, %v958
        %v961 = vsel %vm959, %v958, %v956
        %v963 = vlaneseq
        %v964 = vshrl.u32 %v963, 7
        %v965 = vsub.s32 0, %v964
        %v966 = vrot.slane %v954, %v965
        %v967 = vlaneseq
        %v968 = vshrl.u32 %v967, 7
        %v969 = vsub.s32 1, %v968
        %v970 = vrot.slane %v954, %v969
        %v973 = vmul.f32 %v961, %v966
        %v974 = vmul.f32 %v960, %v970
        %v975 = vadd.f32 %v755, %v973
        %v976 = vadd.f32 %v756, %v974
        %s977 = sld [smem:[#allocation6 + $0x15]]
        %s978 = sld [smem:[#allocation6 + $0x46]]
        %v979 = vstv %s977
        %v980 = vmul.f32 %v979, %v488
        %v981 = vmul.f32 %v979, %v489
        %v982 = vstv %s978
        %v983 = vmul.f32 %v982, %v496
        %v984 = vmul.f32 %v982, %v497
        %v985 = vadd.f32 %v980, %v983
        %v986 = vadd.f32 %v981, %v984
        %v987 = vadd.f32 %v985, 0.0
        %v988 = vadd.f32 %v986, 0.0
        %s989 = sld [smem:[#allocation6 + $0x16]]
        %s990 = sld [smem:[#allocation6 + $0x47]]
        %v991 = vstv %s989
        %v992 = vmul.f32 %v991, %v518
        %v993 = vmul.f32 %v991, %v519
        %v994 = vstv %s990
        %v995 = vmul.f32 %v994, %v526
        %v996 = vmul.f32 %v994, %v527
        %v997 = vadd.f32 %v992, %v995
        %v998 = vadd.f32 %v993, %v996
        %v999 = vadd.f32 %v997, 0.0
        %v1000 = vadd.f32 %v998, 0.0
        %s1001 = sld [smem:[#allocation6 + $0x17]]
        %s1002 = sld [smem:[#allocation6 + $0x48]]
        %v1003 = vstv %s1001
        %v1004 = vmul.f32 %v1003, %v548
        %v1005 = vmul.f32 %v1003, %v549
        %v1006 = vstv %s1002
        %v1007 = vmul.f32 %v1006, %v556
        %v1008 = vmul.f32 %v1006, %v557
        %v1009 = vadd.f32 %v1004, %v1007
        %v1010 = vadd.f32 %v1005, %v1008
        %v1011 = vadd.f32 %v987, %v1009
        %v1012 = vadd.f32 %v988, %v1010
        %s1013 = sld [smem:[#allocation6 + $0x18]]
        %s1014 = sld [smem:[#allocation6 + $0x49]]
        %v1015 = vstv %s1013
        %v1016 = vmul.f32 %v1015, %v448
        %v1017 = vmul.f32 %v1015, %v449
        %v1018 = vstv %s1014
        %v1019 = vmul.f32 %v1018, %v458
        %v1020 = vmul.f32 %v1018, %v467
        %v1021 = vadd.f32 %v1016, %v1019
        %v1022 = vadd.f32 %v1017, %v1020
        %v1023 = vadd.f32 %v999, %v1021
        %v1024 = vadd.f32 %v1000, %v1022
        %s1025 = sld [smem:[#allocation6 + $0x19]]
        %s1026 = sld [smem:[#allocation6 + $0x4a]]
        %v1027 = vstv %s1025
        %v1028 = vmul.f32 %v1027, %v578
        %v1029 = vmul.f32 %v1027, %v579
        %v1030 = vstv %s1026
        %v1031 = vmul.f32 %v1030, %v586
        %v1032 = vmul.f32 %v1030, %v587
        %v1033 = vadd.f32 %v1028, %v1031
        %v1034 = vadd.f32 %v1029, %v1032
        %v1035 = vadd.f32 %v1011, %v1033
        %v1036 = vadd.f32 %v1012, %v1034
        %s1037 = sld [smem:[#allocation6 + $0x1a]]
        %s1038 = sld [smem:[#allocation6 + $0x4b]]
        %v1039 = vstv %s1037
        %v1040 = vmul.f32 %v1039, %v608
        %v1041 = vmul.f32 %v1039, %v609
        %v1042 = vstv %s1038
        %v1043 = vmul.f32 %v1042, %v616
        %v1044 = vmul.f32 %v1042, %v617
        %v1045 = vadd.f32 %v1040, %v1043
        %v1046 = vadd.f32 %v1041, %v1044
        %v1047 = vadd.f32 %v1023, %v1045
        %v1048 = vadd.f32 %v1024, %v1046
        %s1049 = sld [smem:[#allocation6 + $0x1b]]
        %s1050 = sld [smem:[#allocation6 + $0x4c]]
        %v1051 = vstv %s1049
        %v1052 = vmul.f32 %v1051, %v638
        %v1053 = vmul.f32 %v1051, %v639
        %v1054 = vstv %s1050
        %v1055 = vmul.f32 %v1054, %v646
        %v1056 = vmul.f32 %v1054, %v647
        %v1057 = vadd.f32 %v1052, %v1055
        %v1058 = vadd.f32 %v1053, %v1056
        %v1059 = vadd.f32 %v1035, %v1057
        %v1060 = vadd.f32 %v1036, %v1058
        %v1061 = vadd.f32 %v1059, %v1047
        %v1062 = vadd.f32 %v1060, %v1048
        %v1063 = vadd.f32 %v865, %v1061
        %v1064 = vadd.f32 %v866, %v1062
        %s1065 = sld [smem:[#allocation6 + $0x1c]]
        %s1066 = sld [smem:[#allocation6 + $0x4d]]
        %v1067 = vstv %s1065
        %v1068 = vmul.f32 %v1067, %v488
        %v1069 = vmul.f32 %v1067, %v489
        %v1070 = vstv %s1066
        %v1071 = vmul.f32 %v1070, %v496
        %v1072 = vmul.f32 %v1070, %v497
        %v1073 = vadd.f32 %v1068, %v1071
        %v1074 = vadd.f32 %v1069, %v1072
        %v1075 = vadd.f32 %v1073, 0.0
        %v1076 = vadd.f32 %v1074, 0.0
        %s1077 = sld [smem:[#allocation6 + $0x1d]]
        %s1078 = sld [smem:[#allocation6 + $0x4e]]
        %v1079 = vstv %s1077
        %v1080 = vmul.f32 %v1079, %v518
        %v1081 = vmul.f32 %v1079, %v519
        %v1082 = vstv %s1078
        %v1083 = vmul.f32 %v1082, %v526
        %v1084 = vmul.f32 %v1082, %v527
        %v1085 = vadd.f32 %v1080, %v1083
        %v1086 = vadd.f32 %v1081, %v1084
        %v1087 = vadd.f32 %v1085, 0.0
        %v1088 = vadd.f32 %v1086, 0.0
        %s1089 = sld [smem:[#allocation6 + $0x1e]]
        %s1090 = sld [smem:[#allocation6 + $0x4f]]
        %v1091 = vstv %s1089
        %v1092 = vmul.f32 %v1091, %v548
        %v1093 = vmul.f32 %v1091, %v549
        %v1094 = vstv %s1090
        %v1095 = vmul.f32 %v1094, %v556
        %v1096 = vmul.f32 %v1094, %v557
        %v1097 = vadd.f32 %v1092, %v1095
        %v1098 = vadd.f32 %v1093, %v1096
        %v1099 = vadd.f32 %v1075, %v1097
        %v1100 = vadd.f32 %v1076, %v1098
        %s1101 = sld [smem:[#allocation6 + $0x1f]]
        %s1102 = sld [smem:[#allocation6 + $0x50]]
        %v1103 = vstv %s1101
        %v1104 = vmul.f32 %v1103, %v448
        %v1105 = vmul.f32 %v1103, %v449
        %v1106 = vstv %s1102
        %v1107 = vmul.f32 %v1106, %v458
        %v1108 = vmul.f32 %v1106, %v467
        %v1109 = vadd.f32 %v1104, %v1107
        %v1110 = vadd.f32 %v1105, %v1108
        %v1111 = vadd.f32 %v1087, %v1109
        %v1112 = vadd.f32 %v1088, %v1110
        %s1113 = sld [smem:[#allocation6 + $0x20]]
        %s1114 = sld [smem:[#allocation6 + $0x51]]
        %v1115 = vstv %s1113
        %v1116 = vmul.f32 %v1115, %v578
        %v1117 = vmul.f32 %v1115, %v579
        %v1118 = vstv %s1114
        %v1119 = vmul.f32 %v1118, %v586
        %v1120 = vmul.f32 %v1118, %v587
        %v1121 = vadd.f32 %v1116, %v1119
        %v1122 = vadd.f32 %v1117, %v1120
        %v1123 = vadd.f32 %v1099, %v1121
        %v1124 = vadd.f32 %v1100, %v1122
        %s1125 = sld [smem:[#allocation6 + $0x21]]
        %s1126 = sld [smem:[#allocation6 + $0x52]]
        %v1127 = vstv %s1125
        %v1128 = vmul.f32 %v1127, %v608
        %v1129 = vmul.f32 %v1127, %v609
        %v1130 = vstv %s1126
        %v1131 = vmul.f32 %v1130, %v616
        %v1132 = vmul.f32 %v1130, %v617
        %v1133 = vadd.f32 %v1128, %v1131
        %v1134 = vadd.f32 %v1129, %v1132
        %v1135 = vadd.f32 %v1111, %v1133
        %v1136 = vadd.f32 %v1112, %v1134
        %s1137 = sld [smem:[#allocation6 + $0x22]]
        %s1138 = sld [smem:[#allocation6 + $0x53]]
        %v1139 = vstv %s1137
        %v1140 = vmul.f32 %v1139, %v638
        %v1141 = vmul.f32 %v1139, %v639
        %v1142 = vstv %s1138
        %v1143 = vmul.f32 %v1142, %v646
        %v1144 = vmul.f32 %v1142, %v647
        %v1145 = vadd.f32 %v1140, %v1143
        %v1146 = vadd.f32 %v1141, %v1144
        %v1147 = vadd.f32 %v1123, %v1145
        %v1148 = vadd.f32 %v1124, %v1146
        %v1149 = vadd.f32 %v1147, %v1135
        %v1150 = vadd.f32 %v1148, %v1136
        %s1151 = scalar_lea.vmem %s3, 4
        %v1152 = vld [vmem:[%s1151] ss:$8 sm:$0x3]
        %1153 = vrot.lane.b32.xlu0 %v1149, 112
        %v1154 = vpop.permute.xlu0 %1153
        %1155 = vrot.lane.b32.xlu0 %v1150, 112
        %v1156 = vpop.permute.xlu0 %1155
        %vm1157 = vcmp.lt.s32.totalorder %v298, 112
        %v1158 = vsel %vm1157, %v1154, %v1156
        %v1159 = vsel %vm1157, %v1156, %v1154
        %v1161 = vlaneseq
        %v1162 = vshrl.u32 %v1161, 7
        %v1163 = vsub.s32 0, %v1162
        %v1164 = vrot.slane %v1152, %v1163
        %v1165 = vlaneseq
        %v1166 = vshrl.u32 %v1165, 7
        %v1167 = vsub.s32 1, %v1166
        %v1168 = vrot.slane %v1152, %v1167
        %v1171 = vmul.f32 %v1158, %v1164
        %v1172 = vmul.f32 %v1159, %v1168
        %v1173 = vadd.f32 %v975, %v1171
        %v1174 = vadd.f32 %v976, %v1172
        %s1175 = sld [smem:[#allocation6 + $0x23]]
        %s1176 = sld [smem:[#allocation6 + $0x54]]
        %v1177 = vstv %s1175
        %v1178 = vmul.f32 %v1177, %v488
        %v1179 = vmul.f32 %v1177, %v489
        %v1180 = vstv %s1176
        %v1181 = vmul.f32 %v1180, %v496
        %v1182 = vmul.f32 %v1180, %v497
        %v1183 = vadd.f32 %v1178, %v1181
        %v1184 = vadd.f32 %v1179, %v1182
        %v1185 = vadd.f32 %v1183, 0.0
        %v1186 = vadd.f32 %v1184, 0.0
        %s1187 = sld [smem:[#allocation6 + $0x24]]
        %s1188 = sld [smem:[#allocation6 + $0x55]]
        %v1189 = vstv %s1187
        %v1190 = vmul.f32 %v1189, %v518
        %v1191 = vmul.f32 %v1189, %v519
        %v1192 = vstv %s1188
        %v1193 = vmul.f32 %v1192, %v526
        %v1194 = vmul.f32 %v1192, %v527
        %v1195 = vadd.f32 %v1190, %v1193
        %v1196 = vadd.f32 %v1191, %v1194
        %v1197 = vadd.f32 %v1195, 0.0
        %v1198 = vadd.f32 %v1196, 0.0
        %s1199 = sld [smem:[#allocation6 + $0x25]]
        %s1200 = sld [smem:[#allocation6 + $0x56]]
        %v1201 = vstv %s1199
        %v1202 = vmul.f32 %v1201, %v548
        %v1203 = vmul.f32 %v1201, %v549
        %v1204 = vstv %s1200
        %v1205 = vmul.f32 %v1204, %v556
        %v1206 = vmul.f32 %v1204, %v557
        %v1207 = vadd.f32 %v1202, %v1205
        %v1208 = vadd.f32 %v1203, %v1206
        %v1209 = vadd.f32 %v1185, %v1207
        %v1210 = vadd.f32 %v1186, %v1208
        %s1211 = sld [smem:[#allocation6 + $0x26]]
        %s1212 = sld [smem:[#allocation6 + $0x57]]
        %v1213 = vstv %s1211
        %v1214 = vmul.f32 %v1213, %v448
        %v1215 = vmul.f32 %v1213, %v449
        %v1216 = vstv %s1212
        %v1217 = vmul.f32 %v1216, %v458
        %v1218 = vmul.f32 %v1216, %v467
        %v1219 = vadd.f32 %v1214, %v1217
        %v1220 = vadd.f32 %v1215, %v1218
        %v1221 = vadd.f32 %v1197, %v1219
        %v1222 = vadd.f32 %v1198, %v1220
        %s1223 = sld [smem:[#allocation6 + $0x27]]
        %s1224 = sld [smem:[#allocation6 + $0x58]]
        %v1225 = vstv %s1223
        %v1226 = vmul.f32 %v1225, %v578
        %v1227 = vmul.f32 %v1225, %v579
        %v1228 = vstv %s1224
        %v1229 = vmul.f32 %v1228, %v586
        %v1230 = vmul.f32 %v1228, %v587
        %v1231 = vadd.f32 %v1226, %v1229
        %v1232 = vadd.f32 %v1227, %v1230
        %v1233 = vadd.f32 %v1209, %v1231
        %v1234 = vadd.f32 %v1210, %v1232
        %s1235 = sld [smem:[#allocation6 + $0x28]]
        %s1236 = sld [smem:[#allocation6 + $0x59]]
        %v1237 = vstv %s1235
        %v1238 = vmul.f32 %v1237, %v608
        %v1239 = vmul.f32 %v1237, %v609
        %v1240 = vstv %s1236
        %v1241 = vmul.f32 %v1240, %v616
        %v1242 = vmul.f32 %v1240, %v617
        %v1243 = vadd.f32 %v1238, %v1241
        %v1244 = vadd.f32 %v1239, %v1242
        %v1245 = vadd.f32 %v1221, %v1243
        %v1246 = vadd.f32 %v1222, %v1244
        %s1247 = sld [smem:[#allocation6 + $0x29]]
        %s1248 = sld [smem:[#allocation6 + $0x5a]]
        %v1249 = vstv %s1247
        %v1250 = vmul.f32 %v1249, %v638
        %v1251 = vmul.f32 %v1249, %v639
        %v1252 = vstv %s1248
        %v1253 = vmul.f32 %v1252, %v646
        %v1254 = vmul.f32 %v1252, %v647
        %v1255 = vadd.f32 %v1250, %v1253
        %v1256 = vadd.f32 %v1251, %v1254
        %v1257 = vadd.f32 %v1233, %v1255
        %v1258 = vadd.f32 %v1234, %v1256
        %v1259 = vadd.f32 %v1257, %v1245
        %v1260 = vadd.f32 %v1258, %v1246
        %s1261 = scalar_lea.vmem %s3, 5
        %v1262 = vld [vmem:[%s1261] ss:$8 sm:$0x3]
        %1263 = vrot.lane.b32.xlu0 %v1259, 96
        %v1264 = vpop.permute.xlu0 %1263
        %1265 = vrot.lane.b32.xlu0 %v1260, 96
        %v1266 = vpop.permute.xlu0 %1265
        %vm1267 = vcmp.lt.s32.totalorder %v298, 96
        %v1268 = vsel %vm1267, %v1264, %v1266
        %v1269 = vsel %vm1267, %v1266, %v1264
        %v1271 = vlaneseq
        %v1272 = vshrl.u32 %v1271, 7
        %v1273 = vsub.s32 0, %v1272
        %v1274 = vrot.slane %v1262, %v1273
        %v1275 = vlaneseq
        %v1276 = vshrl.u32 %v1275, 7
        %v1277 = vsub.s32 1, %v1276
        %v1278 = vrot.slane %v1262, %v1277
        %v1281 = vmul.f32 %v1268, %v1274
        %v1282 = vmul.f32 %v1269, %v1278
        %v1283 = vadd.f32 %v1063, %v1281
        %v1284 = vadd.f32 %v1064, %v1282
        %s1285 = sld [smem:[#allocation6 + $0x2a]]
        %s1286 = sld [smem:[#allocation6 + $0x5b]]
        %v1287 = vstv %s1285
        %v1288 = vmul.f32 %v1287, %v488
        %v1289 = vmul.f32 %v1287, %v489
        %v1290 = vstv %s1286
        %v1291 = vmul.f32 %v1290, %v496
        %v1292 = vmul.f32 %v1290, %v497
        %v1293 = vadd.f32 %v1288, %v1291
        %v1294 = vadd.f32 %v1289, %v1292
        %v1295 = vadd.f32 %v1293, 0.0
        %v1296 = vadd.f32 %v1294, 0.0
        %s1297 = sld [smem:[#allocation6 + $0x2b]]
        %s1298 = sld [smem:[#allocation6 + $0x5c]]
        %v1299 = vstv %s1297
        %v1300 = vmul.f32 %v1299, %v518
        %v1301 = vmul.f32 %v1299, %v519
        %v1302 = vstv %s1298
        %v1303 = vmul.f32 %v1302, %v526
        %v1304 = vmul.f32 %v1302, %v527
        %v1305 = vadd.f32 %v1300, %v1303
        %v1306 = vadd.f32 %v1301, %v1304
        %v1307 = vadd.f32 %v1305, 0.0
        %v1308 = vadd.f32 %v1306, 0.0
        %s1309 = sld [smem:[#allocation6 + $0x2c]]
        %s1310 = sld [smem:[#allocation6 + $0x5d]]
        %v1311 = vstv %s1309
        %v1312 = vmul.f32 %v1311, %v548
        %v1313 = vmul.f32 %v1311, %v549
        %v1314 = vstv %s1310
        %v1315 = vmul.f32 %v1314, %v556
        %v1316 = vmul.f32 %v1314, %v557
        %v1317 = vadd.f32 %v1312, %v1315
        %v1318 = vadd.f32 %v1313, %v1316
        %v1319 = vadd.f32 %v1295, %v1317
        %v1320 = vadd.f32 %v1296, %v1318
        %s1321 = sld [smem:[#allocation6 + $0x2d]]
        %s1322 = sld [smem:[#allocation6 + $0x5e]]
        %v1323 = vstv %s1321
        %v1324 = vmul.f32 %v1323, %v448
        %v1325 = vmul.f32 %v1323, %v449
        %v1326 = vstv %s1322
        %v1327 = vmul.f32 %v1326, %v458
        %v1328 = vmul.f32 %v1326, %v467
        %v1329 = vadd.f32 %v1324, %v1327
        %v1330 = vadd.f32 %v1325, %v1328
        %v1331 = vadd.f32 %v1307, %v1329
        %v1332 = vadd.f32 %v1308, %v1330
        %s1333 = sld [smem:[#allocation6 + $0x2e]]
        %s1334 = sld [smem:[#allocation6 + $0x5f]]
        %v1335 = vstv %s1333
        %v1336 = vmul.f32 %v1335, %v578
        %v1337 = vmul.f32 %v1335, %v579
        %v1338 = vstv %s1334
        %v1339 = vmul.f32 %v1338, %v586
        %v1340 = vmul.f32 %v1338, %v587
        %v1341 = vadd.f32 %v1336, %v1339
        %v1342 = vadd.f32 %v1337, %v1340
        %v1343 = vadd.f32 %v1319, %v1341
        %v1344 = vadd.f32 %v1320, %v1342
        %s1345 = sld [smem:[#allocation6 + $0x2f]]
        %s1346 = sld [smem:[#allocation6 + $0x60]]
        %v1347 = vstv %s1345
        %v1348 = vmul.f32 %v1347, %v608
        %v1349 = vmul.f32 %v1347, %v609
        %v1350 = vstv %s1346
        %v1351 = vmul.f32 %v1350, %v616
        %v1352 = vmul.f32 %v1350, %v617
        %v1353 = vadd.f32 %v1348, %v1351
        %v1354 = vadd.f32 %v1349, %v1352
        %v1355 = vadd.f32 %v1331, %v1353
        %v1356 = vadd.f32 %v1332, %v1354
        %s1357 = sld [smem:[#allocation6 + $0x30]]
        %s1358 = sld [smem:[#allocation6 + $0x61]]
        %v1359 = vstv %s1357
        %v1360 = vmul.f32 %v1359, %v638
        %v1361 = vmul.f32 %v1359, %v639
        %v1362 = vstv %s1358
        %v1363 = vmul.f32 %v1362, %v646
        %v1364 = vmul.f32 %v1362, %v647
        %v1365 = vadd.f32 %v1360, %v1363
        %v1366 = vadd.f32 %v1361, %v1364
        %v1367 = vadd.f32 %v1343, %v1365
        %v1368 = vadd.f32 %v1344, %v1366
        %v1369 = vadd.f32 %v1367, %v1355
        %v1370 = vadd.f32 %v1368, %v1356
        %s1371 = scalar_lea.vmem %s3, 6
        %v1372 = vld [vmem:[%s1371] ss:$8 sm:$0x3]
        %1373 = vrot.lane.b32.xlu0 %v1369, 80
        %v1374 = vpop.permute.xlu0 %1373
        %1375 = vrot.lane.b32.xlu0 %v1370, 80
        %v1376 = vpop.permute.xlu0 %1375
        %vm1377 = vcmp.lt.s32.totalorder %v298, 80
        %v1378 = vsel %vm1377, %v1374, %v1376
        %v1379 = vsel %vm1377, %v1376, %v1374
        %v1381 = vlaneseq
        %v1382 = vshrl.u32 %v1381, 7
        %v1383 = vsub.s32 0, %v1382
        %v1384 = vrot.slane %v1372, %v1383
        %v1385 = vlaneseq
        %v1386 = vshrl.u32 %v1385, 7
        %v1387 = vsub.s32 1, %v1386
        %v1388 = vrot.slane %v1372, %v1387
        %v1391 = vmul.f32 %v1378, %v1384
        %v1392 = vmul.f32 %v1379, %v1388
        %v1393 = vadd.f32 %v1173, %v1391
        %v1394 = vadd.f32 %v1174, %v1392
        %v1395 = vadd.f32 %v1393, %v1283
        %v1396 = vadd.f32 %v1394, %v1284
        %v1397 = vxor.u32 %v1395, 2147483648
        %v1398 = vxor.u32 %v1396, 2147483648
        %v1399 = vmul.f32 %v1397, 1.442695
        %v1400 = vpow.pop %v1399
        %v1401 = vmul.f32 %v1398, 1.442695
        %v1402 = vpow.pop %v1401
        %v1403 = vadd.f32 %v1400, 1.0
        %v1404 = vadd.f32 %v1402, 1.0
        %v1405 = vrcp.pop %v1403
        %v1406 = vmul.f32 1.0, %v1405
        %v1407 = vrcp.pop %v1404
        %v1408 = vmul.f32 1.0, %v1407
        %v1409 = vlaneseq
        %v1410 = vshrl.u32 %v1409, 7
        %v1411 = vsub.s32 0, %v1410
        %v1412 = vrot.slane %v1406, %v1411
        %v1413 = vlaneseq
        %v1414 = vshrl.u32 %v1413, 7
        %v1415 = vsub.s32 0, %v1414
        %v1416 = vrot.slane %v1408, %v1415
        %v1417 = vmul.f32 %v422, %v1412
        %v1418 = vmul.f32 %v423, %v1416
        %v1419 = vmul.f32 %v424, %v1412
        %v1420 = vmul.f32 %v425, %v1416
        %v1421 = vmul.f32 %v426, %v1412
        %v1422 = vmul.f32 %v427, %v1416
        %v1423 = vmul.f32 %v428, %v1412
        %v1424 = vmul.f32 %v429, %v1416
        %1425 = vst [vmem:[%s256] sm:$0xff] %v1417
        %1426 = vst [vmem:[%s256 + $0x8] sm:$0xff] %v1418
        %1427 = vst [vmem:[%s256 + $0x10] sm:$0xff] %v1419
        %1428 = vst [vmem:[%s256 + $0x18] sm:$0xff] %v1420
        %1429 = vst [vmem:[%s256 + $0x20] sm:$0xff] %v1421
        %1430 = vst [vmem:[%s256 + $0x28] sm:$0xff] %v1422
        %1431 = vst [vmem:[%s256 + $0x30] sm:$0xff] %v1423
        %1432 = vst [vmem:[%s256 + $0x38] sm:$0xff] %v1424
        %s1433 = sand.u32 %s141, 1
        %s1434 = scalar_lea.sflag [#allocation4], %s1433
        %s1435 = sand.u32 %s141, 1
        %s1436 = smul.addr %s1435, 64
        %s1437 = scalar_lea.vmem [#allocation7], %s1436
        // Predicated region
        $region49: #{tpu_custom_call.1} parent=39 // pred_check
          %p1438 = pneg %p151
        $region50: #{tpu_custom_call.1} parent=39 // pred_check_branch
          %1440 = sbr.rel (%p1438) target = $region52
        $region51: #{tpu_custom_call.1} parent=39 // pred_region
          %s1442 = ssub.s32 1024, 1024
          %1443 = vsyncadd %s1434, %s1442
          %s1444 = smul.addr %s23, 8
          %s1445 = smul.addr %s1444, 128
          %s1446 = scalar_lea.hbm %s5, %s1445
          %s1447 = sshll.u32 %s1437, 4
          %s1448 = int_to_ptr.vmem [resolvable:$true] %s1447
          %1453 = dma.vmem_to_hbm [thread:$0]  %s1448, 1024, %s1446, %s1434, 256, 256, 16
        $region52: #{tpu_custom_call.1} parent=39 // pred_fallthru
          _
      $region40: #{tpu_custom_call.1} parent=5 // pred_fallthru
        _
      %p1454 = scmp.le.s32.totalorder 2, %s18
      // Predicated region
      $region53: #{tpu_custom_call.1} parent=5 // pred_check
        %p1455 = pneg %p1454
      $region54: #{tpu_custom_call.1} parent=5 // pred_check_branch
        %1457 = sbr.rel (%p1455) target = $region56
      $region55: #{tpu_custom_call.1} parent=5 // pred_region
        %s1458 = ssub.s32 %s18, 2
        // Predicated region
        $region57: #{tpu_custom_call.1} parent=55 // pred_check
          %p1459 = pneg %p157
        $region58: #{tpu_custom_call.1} parent=55 // pred_check_branch
          %1461 = sbr.rel (%p1459) target = $region60
        $region59: #{tpu_custom_call.1} parent=55 // pred_region
          %s1462 = sand.u32 %s142, 1
          %s1463 = scalar_lea.sflag [#allocation4], %s1462
          %s1464 = sand.u32 %s142, 1
          %s1465 = smul.addr %s1464, 64
          %s1466 = scalar_lea.vmem [#allocation7], %s1465
          %1467 = dma.done %s1463, 1024
        $region60: #{tpu_custom_call.1} parent=55 // pred_fallthru
          _
      $region56: #{tpu_custom_call.1} parent=5 // pred_fallthru
        _
    $region6: #{tpu_custom_call.1} parent=1 // loop_footer
      %s22 = sadd.s32 1, %s18
    $region7: #{tpu_custom_call.1} parent=1 // loop_footer_branch
      %17 = sbr.rel target = $region3
    $region8: #{tpu_custom_call.1} parent=1 // loop_exit
      _
    %1468 = vsyncpa [#allocation3], 1
    %s1469 = scalar_lea.sflag [#allocation3], 1
    %1470 = vsyncpa %s1469, 1
    %1471 = vsyncpa [#allocation4], 1
    %s1472 = scalar_lea.sflag [#allocation4], 1
    %1473 = vsyncpa %s1472, 1
    %1474 = vsyncpa [#allocation5], 1
    %s1475 = scalar_lea.sflag [#allocation5], 1
    %1476 = vsyncpa %s1475, 1

</llo_original>
